<compile_context>
chip_gen: v7x
topology: tpu7x:2x2x1
jax: 0.10.0
libtpu: 0.0.40
codegen_flags: <defaults>
</compile_context>

<pallas_src>
import functools

import jax
import jax.numpy as jnp
from jax.experimental import pallas as pl
from jax.experimental.pallas import tpu as pltpu

LANE = 128     # lane-dense padding for C_out and n_class


def _pick_btile(b):
    # Bigger batch tiles amortize the ~0.35us per-grid-step overhead; keep at
    # least 2 batch steps when the batch allows it so the "parallel" axis can
    # shard across both v7x TensorCores.
    for bt in (64, 32, 16, 8):
        if b >= 2 * bt:
            return bt
    return 8


def _pick_hw_chunk(hw, btile):
    # Target ~512 im2col rows per in-kernel dot so the post-dot f32
    # intermediate stays ~256 KB instead of the whole feature map.
    target = max(8, 512 // btile)
    c = min(target, (hw // 8) * 8)
    while c >= 8:
        if hw % c == 0:
            return c
        c -= 8
    return hw


def _vmem_limit_bytes():
    try:
        cap = int(pltpu.get_tpu_info().vmem_capacity_bytes)
    except Exception:  # pragma: no cover - conservative fallback
        cap = 64 * 1024 * 1024
    return (cap * 3) // 4


# ----------------------------------------------------------------------------
# Fused kernel: im2col-dot conv + bias + ReLU + partial GAP, fc on last step.
#   lhs_ref   : [BTILE, HW_CHUNK, 9*C_in]  bf16   (pre-packed im2col rows)
#   wc_ref    : [9*C_in, C_OUT_PAD]        bf16
#   bc_ref    : [1, C_OUT_PAD]             f32
#   wf_ref    : [C_OUT_PAD, N_PAD]         bf16   (already scaled by 1/(H*W))
#   bf_ref    : [1, N_PAD]                 f32
#   o_ref     : [BTILE, N_PAD]             f32
#   pooled_ref: [BTILE, C_OUT_PAD]         f32    (VMEM scratch accumulator)
# Grid: (batch tiles ["parallel"], H*W chunks ["arbitrary", reduction last]).
# ----------------------------------------------------------------------------
def convnet_fused_kernel(lhs_ref, wc_ref, bc_ref, wf_ref, bf_ref, o_ref,
                         pooled_ref):
    j = pl.program_id(1)

    @pl.when(j == 0)
    def _init():
        pooled_ref[...] = jnp.zeros_like(pooled_ref)

    bt, hwc, k = lhs_ref.shape
    lhs = lhs_ref[...].reshape(bt * hwc, k)

    # Conv for this chunk: one fat-K MXU dot, f32 accumulation.
    acc = jnp.dot(lhs, wc_ref[...], preferred_element_type=jnp.float32)
    acc = jnp.maximum(acc + bc_ref[...], 0.0)            # bias + ReLU (f32)

    # Partial global-average-pool (sum now; 1/(H*W) is folded into wf).
    pooled_ref[...] += jnp.sum(acc.reshape(bt, hwc, -1), axis=1)

    @pl.when(j == pl.num_programs(1) - 1)
    def _finalize():
        logits = jnp.dot(pooled_ref[...].astype(jnp.bfloat16), wf_ref[...],
                         preferred_element_type=jnp.float32)
        o_ref[...] = (logits + bf_ref[...]).astype(o_ref.dtype)


# ----------------------------------------------------------------------------
# Wrapper
# ----------------------------------------------------------------------------
@functools.partial(jax.jit, static_argnames=("n_class",))
def convnet_forward(x_nchw, params, *, n_class):
    """x_nchw: [B, C_in, H, W] float32 -> logits [B, n_class] float32."""
    B, C_in, H, W = x_nchw.shape
    k = params["w_conv"].shape[0]
    assert k == 9 * C_in, (k, C_in)
    c_out_pad = params["w_conv"].shape[1]
    n_pad = params["w_fc"].shape[1]
    hw = H * W

    btile = _pick_btile(B)
    hw_chunk = _pick_hw_chunk(hw, btile)
    b_pad = pl.cdiv(B, btile) * btile

    # --- XLA glue (cheap, done once per call): NCHW -> padded NHWC ->
    #     im2col LHS [B, H*W, 9*C_in], batch-padded, bf16. Lane dim = 9*C_in.
    x = jnp.transpose(x_nchw, (0, 2, 3, 1))                  # [B, H, W, C_in]
    xp = jnp.pad(x, ((0, 0), (1, 1), (1, 1), (0, 0)))
    taps = [xp[:, dh:dh + H, dw:dw + W, :]
            for dh in range(3) for dw in range(3)]
    patches = jnp.stack(taps, axis=3).reshape(B, hw, k)      # [B, HW, 9*C_in]
    if b_pad != B:
        patches = jnp.pad(patches, ((0, b_pad - B), (0, 0), (0, 0)))
    patches = patches.astype(jnp.bfloat16)

    # Fold the 1/(H*W) pooling scale into the fc weight; bf16 MXU operand.
    wf = (params["w_fc"] * (1.0 / hw)).astype(jnp.bfloat16)

    grid = (b_pad // btile, hw // hw_chunk)

    flops = (2 * b_pad * hw * k * c_out_pad          # conv as im2col matmul
             + 2 * b_pad * c_out_pad * n_pad)        # fc head
    bytes_accessed = (patches.size * 2
                      + params["w_conv"].size * 2
                      + params["b_conv"].size * 4
                      + wf.size * 2
                      + params["b_fc"].size * 4
                      + b_pad * n_pad * 4)

    out = pl.pallas_call(
        convnet_fused_kernel,
        out_shape=jax.ShapeDtypeStruct((b_pad, n_pad), jnp.float32),
        grid=grid,
        in_specs=[
            pl.BlockSpec((btile, hw_chunk, k), lambda i, j: (i, j, 0)),
            pl.BlockSpec((k, c_out_pad), lambda i, j: (0, 0)),
            pl.BlockSpec((1, c_out_pad), lambda i, j: (0, 0)),
            pl.BlockSpec((c_out_pad, n_pad), lambda i, j: (0, 0)),
            pl.BlockSpec((1, n_pad), lambda i, j: (0, 0)),
        ],
        out_specs=pl.BlockSpec((btile, n_pad), lambda i, j: (i, 0)),
        scratch_shapes=[pltpu.VMEM((btile, c_out_pad), jnp.float32)],
        compiler_params=pltpu.CompilerParams(
            dimension_semantics=("parallel", "arbitrary"),
            vmem_limit_bytes=_vmem_limit_bytes()),
        cost_estimate=pl.CostEstimate(
            flops=flops, transcendentals=0, bytes_accessed=bytes_accessed),
    )(patches, params["w_conv"], params["b_conv"], wf, params["b_fc"])

    return out[:B, :n_class]


# ----------------------------------------------------------------------------
# Parameter construction (PyTorch layouts -> kernel layouts) + f32 reference
# ----------------------------------------------------------------------------
def init_params(key, c_in=4, c_out=32, n_class=8):
    k1, k2, k3, k4 = jax.random.split(key, 4)
    # PyTorch-style layouts.
    w_conv_pt = jax.random.normal(k1, (c_out, c_in, 3, 3), jnp.float32) * 0.05
    b_conv_pt = jax.random.normal(k2, (c_out,), jnp.float32) * 0.01
    w_fc_pt = jax.random.normal(k3, (n_class, c_out), jnp.float32) * 0.05
    b_fc_pt = jax.random.normal(k4, (n_class,), jnp.float32) * 0.01

    c_out_pad = max(LANE, pl.cdiv(c_out, LANE) * LANE)
    n_pad = max(LANE, pl.cdiv(n_class, LANE) * LANE)

    # Kernel layouts.
    wc = jnp.transpose(w_conv_pt, (2, 3, 1, 0)).reshape(9 * c_in, c_out)
    wc = jnp.pad(wc, ((0, 0), (0, c_out_pad - c_out))).astype(jnp.bfloat16)
    bc = jnp.pad(b_conv_pt, (0, c_out_pad - c_out)).reshape(1, c_out_pad)
    wf = jnp.pad(w_fc_pt.T, ((0, c_out_pad - c_out), (0, n_pad - n_class)))
    bf = jnp.pad(b_fc_pt, (0, n_pad - n_class)).reshape(1, n_pad)

    params = {"w_conv": wc, "b_conv": bc, "w_fc": wf, "b_fc": bf}
    ref_weights = {"w_conv": w_conv_pt, "b_conv": b_conv_pt,
                   "w_fc": w_fc_pt, "b_fc": b_fc_pt}
    return params, ref_weights


def reference_forward(x_nchw, ref):
    """Pure-JAX f32 reference of the stand-in forward pass."""
    x = jnp.transpose(x_nchw, (0, 2, 3, 1))
    w = jnp.transpose(ref["w_conv"], (2, 3, 1, 0))            # HWIO
    y = jax.lax.conv_general_dilated(
        x, w, window_strides=(1, 1), padding="SAME",
        dimension_numbers=("NHWC", "HWIO", "NHWC"))
    y = jnp.maximum(y + ref["b_conv"], 0.0)
    pooled = jnp.mean(y, axis=(1, 2))
    return pooled @ ref["w_fc"].T + ref["b_fc"]


if __name__ == "__main__":
    key = jax.random.PRNGKey(0)
    kx, kp = jax.random.split(key)

    B, C_in, H, W = 2, 4, 16, 16
    n_class = 8

    x = jax.random.normal(kx, (B, C_in, H, W), jnp.float32)   # NCHW, like PyTorch
    params, ref_weights = init_params(kp, c_in=C_in, c_out=32, n_class=n_class)

    logits = convnet_forward(x, params, n_class=n_class)
    jax.block_until_ready(logits)

    assert logits.shape == (B, n_class), logits.shape
    assert logits.dtype == jnp.float32
    assert bool(jnp.all(jnp.isfinite(logits)))

    ref = reference_forward(x, ref_weights)
    max_err = float(jnp.max(jnp.abs(logits - ref)))
    assert bool(jnp.allclose(logits, ref, atol=5e-2, rtol=5e-2)), max_err

    print("KERNEL_OK")
</pallas_src>

<mosaic_0001>
module attributes {stable_mosaic.version = 11 : i64} {
  func.func @convnet_fused_kernel(%arg0: i32, %arg1: i32, %arg2: memref<8x64x36xbf16, #tpu.memory_space<vmem>>, %arg3: memref<36x128xbf16, #tpu.memory_space<vmem>>, %arg4: memref<1x128xf32, #tpu.memory_space<vmem>>, %arg5: memref<128x128xbf16, #tpu.memory_space<vmem>>, %arg6: memref<1x128xf32, #tpu.memory_space<vmem>>, %arg7: memref<8x128xf32, #tpu.memory_space<vmem>>, %arg8: memref<8x128xf32, #tpu.memory_space<vmem>>) attributes {dimension_semantics = [#tpu.dimension_semantics<parallel>, #tpu.dimension_semantics<arbitrary>], iteration_bounds = array<i64: 1, 4>, scalar_prefetch = 0 : i64, scratch_operands = 1 : i64, tpu.core_type = #tpu.core_type<tc>, window_params = [{transform_indices = @transform_0, window_bounds = array<i64: 8, 64, 36>}, {pipeline_mode = #tpu.pipeline_mode<synchronous>, transform_indices = @transform_1, window_bounds = array<i64: 36, 128>}, {pipeline_mode = #tpu.pipeline_mode<synchronous>, transform_indices = @transform_2, window_bounds = array<i64: 1, 128>}, {pipeline_mode = #tpu.pipeline_mode<synchronous>, transform_indices = @transform_3, window_bounds = array<i64: 128, 128>}, {pipeline_mode = #tpu.pipeline_mode<synchronous>, transform_indices = @transform_4, window_bounds = array<i64: 1, 128>}, {transform_indices = @transform_5, window_bounds = array<i64: 8, 128>}]} {
    %c0_i32 = arith.constant 0 : i32
    %0 = arith.cmpi eq, %arg1, %c0_i32 : i32
    %1 = arith.extui %0 : i1 to i32
    %c0_i32_0 = arith.constant 0 : i32
    %2 = arith.cmpi ne, %1, %c0_i32_0 : i32
    scf.if %2 {
      %cst_14 = arith.constant 0.000000e+00 : f32
      %20 = vector.broadcast %cst_14 : f32 to vector<8x128xf32>
      %c0_15 = arith.constant 0 : index
      %c0_16 = arith.constant 0 : index
      %21 = vector.load %arg8[%c0_15, %c0_16] : memref<8x128xf32, #tpu.memory_space<vmem>>, vector<8x128xf32>
      tpu.vector_store %arg8[%c0_15, %c0_16], %20 {strides = array<i32>} : memref<8x128xf32, #tpu.memory_space<vmem>>, vector<8x128xf32>,
    } else {
    }
    %c0 = arith.constant 0 : index
    %c0_1 = arith.constant 0 : index
    %c0_2 = arith.constant 0 : index
    %3 = vector.load %arg2[%c0, %c0_1, %c0_2] : memref<8x64x36xbf16, #tpu.memory_space<vmem>>, vector<8x64x36xbf16>
    %4 = vector.shape_cast %3 : vector<8x64x36xbf16> to vector<512x36xbf16>
    %c0_3 = arith.constant 0 : index
    %c0_4 = arith.constant 0 : index
    %5 = vector.load %arg3[%c0_3, %c0_4] : memref<36x128xbf16, #tpu.memory_space<vmem>>, vector<36x128xbf16>
    %cst = arith.constant dense<0.000000e+00> : vector<512x128xf32>
    %6 = tpu.matmul %4, %5, %cst {dimension_numbers = #tpu.dot_dimension_numbers<[1], [0], [0], [1], [0, 0, 1, 1], [], []>} : vector<512x36xbf16>, vector<36x128xbf16>, vector<512x128xf32> -> vector<512x128xf32>
    %c0_5 = arith.constant 0 : index
    %c0_6 = arith.constant 0 : index
    %7 = vector.load %arg4[%c0_5, %c0_6] : memref<1x128xf32, #tpu.memory_space<vmem>>, vector<1x128xf32>
    %8 = vector.broadcast %7 : vector<1x128xf32> to vector<512x128xf32>
    %9 = arith.addf %6, %8 : vector<512x128xf32>
    %cst_7 = arith.constant 0.000000e+00 : f32
    %10 = vector.broadcast %cst_7 : f32 to vector<512x128xf32>
    %11 = arith.maximumf %9, %10 : vector<512x128xf32>
    %c0_8 = arith.constant 0 : index
    %c0_9 = arith.constant 0 : index
    %12 = vector.load %arg8[%c0_8, %c0_9] : memref<8x128xf32, #tpu.memory_space<vmem>>, vector<8x128xf32>
    %13 = vector.shape_cast %11 : vector<512x128xf32> to vector<8x64x128xf32>
    %cst_10 = arith.constant dense<0.000000e+00> : vector<8x128xf32>
    %14 = vector.multi_reduction <add>, %13, %cst_10 [1] : vector<8x64x128xf32> to vector<8x128xf32>
    %15 = arith.addf %12, %14 : vector<8x128xf32>
    %c0_11 = arith.constant 0 : index
    %c0_12 = arith.constant 0 : index
    %16 = vector.load %arg8[%c0_11, %c0_12] : memref<8x128xf32, #tpu.memory_space<vmem>>, vector<8x128xf32>
    tpu.vector_store %arg8[%c0_11, %c0_12], %15 {strides = array<i32>} : memref<8x128xf32, #tpu.memory_space<vmem>>, vector<8x128xf32>,
    %c3_i32 = arith.constant 3 : i32
    %17 = arith.cmpi eq, %arg1, %c3_i32 : i32
    %18 = arith.extui %17 : i1 to i32
    %c0_i32_13 = arith.constant 0 : i32
    %19 = arith.cmpi ne, %18, %c0_i32_13 : i32
    scf.if %19 {
      %c0_14 = arith.constant 0 : index
      %c0_15 = arith.constant 0 : index
      %20 = vector.load %arg8[%c0_14, %c0_15] : memref<8x128xf32, #tpu.memory_space<vmem>>, vector<8x128xf32>
      %21 = arith.truncf %20 : vector<8x128xf32> to vector<8x128xbf16>
      %c0_16 = arith.constant 0 : index
      %c0_17 = arith.constant 0 : index
      %22 = vector.load %arg5[%c0_16, %c0_17] : memref<128x128xbf16, #tpu.memory_space<vmem>>, vector<128x128xbf16>
      %cst_18 = arith.constant dense<0.000000e+00> : vector<8x128xf32>
      %23 = tpu.matmul %21, %22, %cst_18 {dimension_numbers = #tpu.dot_dimension_numbers<[1], [0], [0], [1], [0, 0, 1, 1], [], []>} : vector<8x128xbf16>, vector<128x128xbf16>, vector<8x128xf32> -> vector<8x128xf32>
      %c0_19 = arith.constant 0 : index
      %c0_20 = arith.constant 0 : index
      %24 = vector.load %arg6[%c0_19, %c0_20] : memref<1x128xf32, #tpu.memory_space<vmem>>, vector<1x128xf32>
      %25 = vector.broadcast %24 : vector<1x128xf32> to vector<8x128xf32>
      %26 = arith.addf %23, %25 : vector<8x128xf32>
      %c0_21 = arith.constant 0 : index
      %c0_22 = arith.constant 0 : index
      %27 = vector.load %arg7[%c0_21, %c0_22] : memref<8x128xf32, #tpu.memory_space<vmem>>, vector<8x128xf32>
      tpu.vector_store %arg7[%c0_21, %c0_22], %26 {strides = array<i32>} : memref<8x128xf32, #tpu.memory_space<vmem>>, vector<8x128xf32>,
    } else {
    }
    return
  }
  func.func @transform_0(%arg0: i32, %arg1: i32) -> (i32, i32, i32) {
    %c0_i32 = arith.constant 0 : i32
    %c0_i32_0 = arith.constant 0 : i32
    return %arg0, %arg1, %c0_i32 : i32, i32, i32
  }
  func.func @transform_1(%arg0: i32, %arg1: i32) -> (i32, i32) {
    %c0_i32 = arith.constant 0 : i32
    %c0_i32_0 = arith.constant 0 : i32
    %c0_i32_1 = arith.constant 0 : i32
    return %c0_i32, %c0_i32_0 : i32, i32
  }
  func.func @transform_2(%arg0: i32, %arg1: i32) -> (i32, i32) {
    %c0_i32 = arith.constant 0 : i32
    %c0_i32_0 = arith.constant 0 : i32
    %c0_i32_1 = arith.constant 0 : i32
    return %c0_i32, %c0_i32_0 : i32, i32
  }
  func.func @transform_3(%arg0: i32, %arg1: i32) -> (i32, i32) {
    %c0_i32 = arith.constant 0 : i32
    %c0_i32_0 = arith.constant 0 : i32
    %c0_i32_1 = arith.constant 0 : i32
    return %c0_i32, %c0_i32_0 : i32, i32
  }
  func.func @transform_4(%arg0: i32, %arg1: i32) -> (i32, i32) {
    %c0_i32 = arith.constant 0 : i32
    %c0_i32_0 = arith.constant 0 : i32
    %c0_i32_1 = arith.constant 0 : i32
    return %c0_i32, %c0_i32_0 : i32, i32
  }
  func.func @transform_5(%arg0: i32, %arg1: i32) -> (i32, i32) {
    %c0_i32 = arith.constant 0 : i32
    %c0_i32_0 = arith.constant 0 : i32
    return %arg0, %c0_i32 : i32, i32
  }
}

</mosaic_0001>

<llo_original>
// kernel: convnet_forward.1
$region0: #{convnet_forward.1}
  #allocation0 [shape = 'u32[]', space=smem, size = 0x4, offset = 0x4, fixed_abs, tag = 'smem constant byte address 0x4 - core index']
  #allocation1 [shape = 'u32[144,128]{1,0:T(1,128)}', space=vmem, size = 0x12000, scoped, tag = 'internal scratch']
  #allocation2 [shape = 'f32[8,128]{1,0:T(8,128)}', space=vmem, size = 0x1000, scoped, tag = 'scratch operand']
  %s0 = inlined_call_operand.vmem [shape: bf16[8,256,36], index: 0, kind: input, shape index: {}]
  %s1 = inlined_call_operand.vmem [shape: bf16[36,128], index: 1, kind: input, shape index: {}]
  %s2 = inlined_call_operand.vmem [shape: f32[1,128], index: 2, kind: input, shape index: {}]
  %s3 = inlined_call_operand.vmem [shape: bf16[128,128], index: 3, kind: input, shape index: {}]
  %s4 = inlined_call_operand.vmem [shape: f32[1,128], index: 4, kind: input, shape index: {}]
  %s5 = inlined_call_operand.vmem [shape: f32[8,128], index: 5, kind: output, shape index: {}]
  %s6 = sld [smem:[#allocation0]]
  $region102: #{convnet_forward.1} parent=0
    _
  %s8 = ssub.s32 1, %s6
  %s9 = scalar_select 0, %s8, %s6
  $region1: #{convnet_forward.1} parent=0
    #allocation3 [shape = 'u8[262144]{0}', space=vmem, size = 0x40000, scoped, tag = 'input window, operand 0']
    loop: start=0, step=1, limit=6
    $region2: #{convnet_forward.1} parent=1 // loop_pre_header
      _
    $region3: #{convnet_forward.1} parent=1 // loop_header
      %s11 = sphi 0, %s15
      %p12 = scmp.ge.s32.totalorder %s11, 6
      %s18 = sphi 0, %s30
      %s19 = sphi 0, %s26
      %s20 = sphi 0, %s18
      %s21 = sphi 0, %s19
      %s22 = sphi 0, %s20
      %s23 = sphi 0, %s21
      %s35 = sphi 0, %s37
      %s38 = sphi 0, %s35
      %s39 = sphi 0, %s38
      %s55 = sphi 0, %s39
      %s59 = sphi 0, %s59
      %s61 = sphi 0, %s59
      %s62 = sphi 0, %s61
      %s76 = sphi 0, %s62
      %s80 = sphi 0, %s80
      %s82 = sphi 0, %s80
      %s83 = sphi 0, %s82
      %s97 = sphi 0, %s83
      %s101 = sphi 0, %s101
      %s103 = sphi 0, %s101
      %s104 = sphi 0, %s103
      %s118 = sphi 0, %s104
      %s122 = sphi 0, %s122
      %s124 = sphi 0, %s122
      %s125 = sphi 0, %s124
      %s139 = sphi 0, %s125
      %s145 = sphi 0, %s147
      %s148 = sphi 0, %s145
      %s149 = sphi 0, %s148
      %s165 = sphi 0, %s149
    $region4: #{convnet_forward.1} parent=1 // loop_header_branch
      %14 = sbr.rel (%p12) target = $region8
    $region5: #{convnet_forward.1} parent=1 // loop_body
      %s16 = ssub.s32 %s11, 1
      %s17 = ssub.s32 %s11, 2
      %s24 = sadd.s32 1, %s19
      %p25 = scmp.ge.s32.totalorder %s24, 4
      %s26 = scalar_select %p25, 0, %s24
      %s27 = sadd.s32 1, %s18
      %s28 = scalar_select %p25, %s27, %s18
      %p29 = scmp.ge.s32.totalorder %s28, 1
      %s30 = scalar_select %p29, 0, %s28
      %s31 = ssub.s32 %s18, %s30
      %s32 = ssub.s32 %s19, %s26
      %s33 = sor.u32 %s31, %s32
      %p34 = scmp.eq.s32.totalorder %s33, 0
      %s36 = sadd.s32 %s35, 1
      %s37 = scalar_select %p34, %s35, %s36
      %p40 = pneg %p34
      %p41 = scmp.eq.s32.totalorder %s11, 3
      %p42 = por %p40, %p41
      %p43 = scmp.ne.s32.totalorder %s35, %s38
      %p44 = scmp.eq.s32.totalorder %s11, 0
      %p45 = por %p43, %p44
      %p46 = scmp.ne.s32.totalorder %s35, %s38
      %p47 = scmp.eq.s32.totalorder %s16, 3
      %p48 = por %p46, %p47
      %p49 = scmp.ne.s32.totalorder %s38, %s39
      %p50 = scmp.eq.s32.totalorder %s16, 0
      %p51 = por %p49, %p50
      %p52 = scmp.ne.s32.totalorder %s38, %s39
      %p53 = scmp.eq.s32.totalorder %s17, 3
      %p54 = por %p52, %p53
      %p56 = scmp.ne.s32.totalorder %s39, %s55
      %p57 = scmp.eq.s32.totalorder %s17, 0
      %p58 = por %p56, %p57
      %s60 = sadd.s32 %s59, 1
      %p63 = scmp.eq.s32.totalorder %s11, 3
      %p64 = scmp.ne.s32.totalorder %s59, %s61
      %p65 = scmp.eq.s32.totalorder %s11, 0
      %p66 = por %p64, %p65
      %p67 = scmp.ne.s32.totalorder %s59, %s61
      %p68 = scmp.eq.s32.totalorder %s16, 3
      %p69 = por %p67, %p68
      %p70 = scmp.ne.s32.totalorder %s61, %s62
      %p71 = scmp.eq.s32.totalorder %s16, 0
      %p72 = por %p70, %p71
      %p73 = scmp.ne.s32.totalorder %s61, %s62
      %p74 = scmp.eq.s32.totalorder %s17, 3
      %p75 = por %p73, %p74
      %p77 = scmp.ne.s32.totalorder %s62, %s76
      %p78 = scmp.eq.s32.totalorder %s17, 0
      %p79 = por %p77, %p78
      %s81 = sadd.s32 %s80, 1
      %p84 = scmp.eq.s32.totalorder %s11, 3
      %p85 = scmp.ne.s32.totalorder %s80, %s82
      %p86 = scmp.eq.s32.totalorder %s11, 0
      %p87 = por %p85, %p86
      %p88 = scmp.ne.s32.totalorder %s80, %s82
      %p89 = scmp.eq.s32.totalorder %s16, 3
      %p90 = por %p88, %p89
      %p91 = scmp.ne.s32.totalorder %s82, %s83
      %p92 = scmp.eq.s32.totalorder %s16, 0
      %p93 = por %p91, %p92
      %p94 = scmp.ne.s32.totalorder %s82, %s83
      %p95 = scmp.eq.s32.totalorder %s17, 3
      %p96 = por %p94, %p95
      %p98 = scmp.ne.s32.totalorder %s83, %s97
      %p99 = scmp.eq.s32.totalorder %s17, 0
      %p100 = por %p98, %p99
      %s102 = sadd.s32 %s101, 1
      %p105 = scmp.eq.s32.totalorder %s11, 3
      %p106 = scmp.ne.s32.totalorder %s101, %s103
      %p107 = scmp.eq.s32.totalorder %s11, 0
      %p108 = por %p106, %p107
      %p109 = scmp.ne.s32.totalorder %s101, %s103
      %p110 = scmp.eq.s32.totalorder %s16, 3
      %p111 = por %p109, %p110
      %p112 = scmp.ne.s32.totalorder %s103, %s104
      %p113 = scmp.eq.s32.totalorder %s16, 0
      %p114 = por %p112, %p113
      %p115 = scmp.ne.s32.totalorder %s103, %s104
      %p116 = scmp.eq.s32.totalorder %s17, 3
      %p117 = por %p115, %p116
      %p119 = scmp.ne.s32.totalorder %s104, %s118
      %p120 = scmp.eq.s32.totalorder %s17, 0
      %p121 = por %p119, %p120
      %s123 = sadd.s32 %s122, 1
      %p126 = scmp.eq.s32.totalorder %s11, 3
      %p127 = scmp.ne.s32.totalorder %s122, %s124
      %p128 = scmp.eq.s32.totalorder %s11, 0
      %p129 = por %p127, %p128
      %p130 = scmp.ne.s32.totalorder %s122, %s124
      %p131 = scmp.eq.s32.totalorder %s16, 3
      %p132 = por %p130, %p131
      %p133 = scmp.ne.s32.totalorder %s124, %s125
      %p134 = scmp.eq.s32.totalorder %s16, 0
      %p135 = por %p133, %p134
      %p136 = scmp.ne.s32.totalorder %s124, %s125
      %p137 = scmp.eq.s32.totalorder %s17, 3
      %p138 = por %p136, %p137
      %p140 = scmp.ne.s32.totalorder %s125, %s139
      %p141 = scmp.eq.s32.totalorder %s17, 0
      %p142 = por %p140, %p141
      %s143 = ssub.s32 %s18, %s30
      %p144 = scmp.eq.s32.totalorder %s143, 0
      %s146 = sadd.s32 %s145, 1
      %s147 = scalar_select %p144, %s145, %s146
      %p150 = pneg %p144
      %p151 = scmp.eq.s32.totalorder %s11, 3
      %p152 = por %p150, %p151
      %p153 = scmp.ne.s32.totalorder %s145, %s148
      %p154 = scmp.eq.s32.totalorder %s11, 0
      %p155 = por %p153, %p154
      %p156 = scmp.ne.s32.totalorder %s145, %s148
      %p157 = scmp.eq.s32.totalorder %s16, 3
      %p158 = por %p156, %p157
      %p159 = scmp.ne.s32.totalorder %s148, %s149
      %p160 = scmp.eq.s32.totalorder %s16, 0
      %p161 = por %p159, %p160
      %p162 = scmp.ne.s32.totalorder %s148, %s149
      %p163 = scmp.eq.s32.totalorder %s17, 3
      %p164 = por %p162, %p163
      %p166 = scmp.ne.s32.totalorder %s149, %s165
      %p167 = scmp.eq.s32.totalorder %s17, 0
      %p168 = por %p166, %p167
      %p169 = scmp.le.s32.totalorder 1, %s11
      %p170 = scmp.lt.s32.totalorder %s11, 5
      %p171 = pnand %p169, %p170
      %p172 = pneg %p171
      // Predicated region
      $region9: #{convnet_forward.1} parent=5 // pred_check
        _
      $region10: #{convnet_forward.1} parent=5 // pred_check_branch
        %174 = sbr.rel (%p171) target = $region12
      $region11: #{convnet_forward.1} parent=5 // pred_region
        %s175 = ssub.s32 %s11, 1
        // Predicated region
        $region13: #{convnet_forward.1} parent=11 // pred_check
          %p176 = pneg %p72
        $region14: #{convnet_forward.1} parent=11 // pred_check_branch
          %178 = sbr.rel (%p176) target = $region16
        $region15: #{convnet_forward.1} parent=11 // pred_region
          _
        $region16: #{convnet_forward.1} parent=11 // pred_fallthru
          _
        // Predicated region
        $region17: #{convnet_forward.1} parent=11 // pred_check
          %p179 = pneg %p93
        $region18: #{convnet_forward.1} parent=11 // pred_check_branch
          %181 = sbr.rel (%p179) target = $region20
        $region19: #{convnet_forward.1} parent=11 // pred_region
          _
        $region20: #{convnet_forward.1} parent=11 // pred_fallthru
          _
        // Predicated region
        $region21: #{convnet_forward.1} parent=11 // pred_check
          %p182 = pneg %p114
        $region22: #{convnet_forward.1} parent=11 // pred_check_branch
          %184 = sbr.rel (%p182) target = $region24
        $region23: #{convnet_forward.1} parent=11 // pred_region
          _
        $region24: #{convnet_forward.1} parent=11 // pred_fallthru
          _
        // Predicated region
        $region25: #{convnet_forward.1} parent=11 // pred_check
          %p185 = pneg %p135
        $region26: #{convnet_forward.1} parent=11 // pred_check_branch
          %187 = sbr.rel (%p185) target = $region28
        $region27: #{convnet_forward.1} parent=11 // pred_region
          _
        $region28: #{convnet_forward.1} parent=11 // pred_fallthru
          _
      $region12: #{convnet_forward.1} parent=5 // pred_fallthru
        _
      %p188 = scmp.lt.s32.totalorder %s11, 4
      // Predicated region
      $region29: #{convnet_forward.1} parent=5 // pred_check
        %p189 = pneg %p188
      $region30: #{convnet_forward.1} parent=5 // pred_check_branch
        %191 = sbr.rel (%p189) target = $region32
      $region31: #{convnet_forward.1} parent=5 // pred_region
        // Predicated region
        $region33: #{convnet_forward.1} parent=31 // pred_check
          %p192 = pneg %p45
        $region34: #{convnet_forward.1} parent=31 // pred_check_branch
          %194 = sbr.rel (%p192) target = $region36
        $region35: #{convnet_forward.1} parent=31 // pred_region
          %s195 = sand.u32 %s35, 1
          %s196 = sand.u32 %s35, 1
          %s197 = smul.addr %s196, 256
          %s198 = scalar_lea.vmem [#allocation3], %s197
          %s199 = smul.u32 8, %s18
          %s200 = smul.u32 8, %s19
          %s201 = smul.addr %s199, 32
          %s202 = sadd.s32 %s200, %s201
          %s203 = smul.addr %s202, 4
          %s204 = scalar_lea.vmem %s0, %s203
          // Predicated region
          $region37: #{convnet_forward.1} parent=35 // pred_check
            _
          $region38: #{convnet_forward.1} parent=35 // pred_check_branch
            %206 = sbr.rel (0) target = $region40
          $region39: #{convnet_forward.1} parent=35 // pred_region
            // Predicated region
            $region41: #{convnet_forward.1} parent=39 // pred_check
              _
            $region42: #{convnet_forward.1} parent=39 // pred_check_branch
              %208 = sbr.rel target = $region44
            $region43: #{convnet_forward.1} parent=39 // pred_region
              // Predicated region
              $region56: #{convnet_forward.1} parent=43 // pred_check
                _
              $region57: #{convnet_forward.1} parent=43 // pred_check_branch
                %349 = sbr.rel (0) target = $region59
              $region58: #{convnet_forward.1} parent=43 // pred_region
                loop: start=0, step=1, limit=1
                $region60: #{convnet_forward.1} parent=58 // loop_pre_header
                  _
                $region61: #{convnet_forward.1} parent=58 // loop_header
                  %s351 = sphi 0, %s355
                  %p352 = scmp.ge.s32.totalorder %s351, 1
                  %s356 = sphi %s204, %s204
                  %s357 = sphi %s198, %s198
                $region62: #{convnet_forward.1} parent=58 // loop_header_branch
                  %354 = sbr.rel (%p352) target = $region66
                $region63: #{convnet_forward.1} parent=58 // loop_body
                  _
                $region64: #{convnet_forward.1} parent=58 // loop_footer
                  %s355 = sadd.s32 1, %s351
                $region65: #{convnet_forward.1} parent=58 // loop_footer_branch
                  %350 = sbr.rel target = $region61
                $region66: #{convnet_forward.1} parent=58 // loop_exit
                  _
                loop: start=0, step=1, limit=1
                $region67: #{convnet_forward.1} parent=58 // loop_pre_header
                  _
                $region68: #{convnet_forward.1} parent=58 // loop_header
                  %s360 = sphi 0, %s364
                  %p361 = scmp.ge.s32.totalorder %s360, 1
                  %s365 = sphi %s204, %s204
                  %s366 = sphi %s198, %s198
                $region69: #{convnet_forward.1} parent=58 // loop_header_branch
                  %363 = sbr.rel (%p361) target = $region73
                $region70: #{convnet_forward.1} parent=58 // loop_body
                  %v367 = vld [vmem:[%s365] sm:$0xf]
                  %368 = vst [vmem:[%s366] sm:$0xf] %v367
                  %v369 = vld [vmem:[%s365 + $0x4] sm:$0xf]
                  %370 = vst [vmem:[%s366 + $0x4] sm:$0xf] %v369
                  %v371 = vld [vmem:[%s365 + $0x8] sm:$0xf]
                  %372 = vst [vmem:[%s366 + $0x8] sm:$0xf] %v371
                  %v373 = vld [vmem:[%s365 + $0xc] sm:$0xf]
                  %374 = vst [vmem:[%s366 + $0xc] sm:$0xf] %v373
                  %v375 = vld [vmem:[%s365 + $0x10] sm:$0xf]
                  %376 = vst [vmem:[%s366 + $0x10] sm:$0xf] %v375
                  %v377 = vld [vmem:[%s365 + $0x14] sm:$0xf]
                  %378 = vst [vmem:[%s366 + $0x14] sm:$0xf] %v377
                  %v379 = vld [vmem:[%s365 + $0x18] sm:$0xf]
                  %380 = vst [vmem:[%s366 + $0x18] sm:$0xf] %v379
                  %v381 = vld [vmem:[%s365 + $0x1c] sm:$0xf]
                  %382 = vst [vmem:[%s366 + $0x1c] sm:$0xf] %v381
                  %v383 = vld [vmem:[%s365 + $0x80] sm:$0xf]
                  %384 = vst [vmem:[%s366 + $0x20] sm:$0xf] %v383
                  %v385 = vld [vmem:[%s365 + $0x84] sm:$0xf]
                  %386 = vst [vmem:[%s366 + $0x24] sm:$0xf] %v385
                  %v387 = vld [vmem:[%s365 + $0x88] sm:$0xf]
                  %388 = vst [vmem:[%s366 + $0x28] sm:$0xf] %v387
                  %v389 = vld [vmem:[%s365 + $0x8c] sm:$0xf]
                  %390 = vst [vmem:[%s366 + $0x2c] sm:$0xf] %v389
                  %v391 = vld [vmem:[%s365 + $0x90] sm:$0xf]
                  %392 = vst [vmem:[%s366 + $0x30] sm:$0xf] %v391
                  %v393 = vld [vmem:[%s365 + $0x94] sm:$0xf]
                  %394 = vst [vmem:[%s366 + $0x34] sm:$0xf] %v393
                  %v395 = vld [vmem:[%s365 + $0x98] sm:$0xf]
                  %396 = vst [vmem:[%s366 + $0x38] sm:$0xf] %v395
                  %v397 = vld [vmem:[%s365 + $0x9c] sm:$0xf]
                  %398 = vst [vmem:[%s366 + $0x3c] sm:$0xf] %v397
                  %v399 = vld [vmem:[%s365 + $0x100] sm:$0xf]
                  %400 = vst [vmem:[%s366 + $0x40] sm:$0xf] %v399
                  %v401 = vld [vmem:[%s365 + $0x104] sm:$0xf]
                  %402 = vst [vmem:[%s366 + $0x44] sm:$0xf] %v401
                  %v403 = vld [vmem:[%s365 + $0x108] sm:$0xf]
                  %404 = vst [vmem:[%s366 + $0x48] sm:$0xf] %v403
                  %v405 = vld [vmem:[%s365 + $0x10c] sm:$0xf]
                  %406 = vst [vmem:[%s366 + $0x4c] sm:$0xf] %v405
                  %v407 = vld [vmem:[%s365 + $0x110] sm:$0xf]
                  %408 = vst [vmem:[%s366 + $0x50] sm:$0xf] %v407
                  %v409 = vld [vmem:[%s365 + $0x114] sm:$0xf]
                  %410 = vst [vmem:[%s366 + $0x54] sm:$0xf] %v409
                  %v411 = vld [vmem:[%s365 + $0x118] sm:$0xf]
                  %412 = vst [vmem:[%s366 + $0x58] sm:$0xf] %v411
                  %v413 = vld [vmem:[%s365 + $0x11c] sm:$0xf]
                  %414 = vst [vmem:[%s366 + $0x5c] sm:$0xf] %v413
                  %v415 = vld [vmem:[%s365 + $0x180] sm:$0xf]
                  %416 = vst [vmem:[%s366 + $0x60] sm:$0xf] %v415
                  %v417 = vld [vmem:[%s365 + $0x184] sm:$0xf]
                  %418 = vst [vmem:[%s366 + $0x64] sm:$0xf] %v417
                  %v419 = vld [vmem:[%s365 + $0x188] sm:$0xf]
                  %420 = vst [vmem:[%s366 + $0x68] sm:$0xf] %v419
                  %v421 = vld [vmem:[%s365 + $0x18c] sm:$0xf]
                  %422 = vst [vmem:[%s366 + $0x6c] sm:$0xf] %v421
                  %v423 = vld [vmem:[%s365 + $0x190] sm:$0xf]
                  %424 = vst [vmem:[%s366 + $0x70] sm:$0xf] %v423
                  %v425 = vld [vmem:[%s365 + $0x194] sm:$0xf]
                  %426 = vst [vmem:[%s366 + $0x74] sm:$0xf] %v425
                  %v427 = vld [vmem:[%s365 + $0x198] sm:$0xf]
                  %428 = vst [vmem:[%s366 + $0x78] sm:$0xf] %v427
                  %v429 = vld [vmem:[%s365 + $0x19c] sm:$0xf]
                  %430 = vst [vmem:[%s366 + $0x7c] sm:$0xf] %v429
                  %v431 = vld [vmem:[%s365 + $0x200] sm:$0xf]
                  %432 = vst [vmem:[%s366 + $0x80] sm:$0xf] %v431
                  %v433 = vld [vmem:[%s365 + $0x204] sm:$0xf]
                  %434 = vst [vmem:[%s366 + $0x84] sm:$0xf] %v433
                  %v435 = vld [vmem:[%s365 + $0x208] sm:$0xf]
                  %436 = vst [vmem:[%s366 + $0x88] sm:$0xf] %v435
                  %v437 = vld [vmem:[%s365 + $0x20c] sm:$0xf]
                  %438 = vst [vmem:[%s366 + $0x8c] sm:$0xf] %v437
                  %v439 = vld [vmem:[%s365 + $0x210] sm:$0xf]
                  %440 = vst [vmem:[%s366 + $0x90] sm:$0xf] %v439
                  %v441 = vld [vmem:[%s365 + $0x214] sm:$0xf]
                  %442 = vst [vmem:[%s366 + $0x94] sm:$0xf] %v441
                  %v443 = vld [vmem:[%s365 + $0x218] sm:$0xf]
                  %444 = vst [vmem:[%s366 + $0x98] sm:$0xf] %v443
                  %v445 = vld [vmem:[%s365 + $0x21c] sm:$0xf]
                  %446 = vst [vmem:[%s366 + $0x9c] sm:$0xf] %v445
                  %v447 = vld [vmem:[%s365 + $0x280] sm:$0xf]
                  %448 = vst [vmem:[%s366 + $0xa0] sm:$0xf] %v447
                  %v449 = vld [vmem:[%s365 + $0x284] sm:$0xf]
                  %450 = vst [vmem:[%s366 + $0xa4] sm:$0xf] %v449
                  %v451 = vld [vmem:[%s365 + $0x288] sm:$0xf]
                  %452 = vst [vmem:[%s366 + $0xa8] sm:$0xf] %v451
                  %v453 = vld [vmem:[%s365 + $0x28c] sm:$0xf]
                  %454 = vst [vmem:[%s366 + $0xac] sm:$0xf] %v453
                  %v455 = vld [vmem:[%s365 + $0x290] sm:$0xf]
                  %456 = vst [vmem:[%s366 + $0xb0] sm:$0xf] %v455
                  %v457 = vld [vmem:[%s365 + $0x294] sm:$0xf]
                  %458 = vst [vmem:[%s366 + $0xb4] sm:$0xf] %v457
                  %v459 = vld [vmem:[%s365 + $0x298] sm:$0xf]
                  %460 = vst [vmem:[%s366 + $0xb8] sm:$0xf] %v459
                  %v461 = vld [vmem:[%s365 + $0x29c] sm:$0xf]
                  %462 = vst [vmem:[%s366 + $0xbc] sm:$0xf] %v461
                  %v463 = vld [vmem:[%s365 + $0x300] sm:$0xf]
                  %464 = vst [vmem:[%s366 + $0xc0] sm:$0xf] %v463
                  %v465 = vld [vmem:[%s365 + $0x304] sm:$0xf]
                  %466 = vst [vmem:[%s366 + $0xc4] sm:$0xf] %v465
                  %v467 = vld [vmem:[%s365 + $0x308] sm:$0xf]
                  %468 = vst [vmem:[%s366 + $0xc8] sm:$0xf] %v467
                  %v469 = vld [vmem:[%s365 + $0x30c] sm:$0xf]
                  %470 = vst [vmem:[%s366 + $0xcc] sm:$0xf] %v469
                  %v471 = vld [vmem:[%s365 + $0x310] sm:$0xf]
                  %472 = vst [vmem:[%s366 + $0xd0] sm:$0xf] %v471
                  %v473 = vld [vmem:[%s365 + $0x314] sm:$0xf]
                  %474 = vst [vmem:[%s366 + $0xd4] sm:$0xf] %v473
                  %v475 = vld [vmem:[%s365 + $0x318] sm:$0xf]
                  %476 = vst [vmem:[%s366 + $0xd8] sm:$0xf] %v475
                  %v477 = vld [vmem:[%s365 + $0x31c] sm:$0xf]
                  %478 = vst [vmem:[%s366 + $0xdc] sm:$0xf] %v477
                  %v479 = vld [vmem:[%s365 + $0x380] sm:$0xf]
                  %480 = vst [vmem:[%s366 + $0xe0] sm:$0xf] %v479
                  %v481 = vld [vmem:[%s365 + $0x384] sm:$0xf]
                  %482 = vst [vmem:[%s366 + $0xe4] sm:$0xf] %v481
                  %v483 = vld [vmem:[%s365 + $0x388] sm:$0xf]
                  %484 = vst [vmem:[%s366 + $0xe8] sm:$0xf] %v483
                  %v485 = vld [vmem:[%s365 + $0x38c] sm:$0xf]
                  %486 = vst [vmem:[%s366 + $0xec] sm:$0xf] %v485
                  %v487 = vld [vmem:[%s365 + $0x390] sm:$0xf]
                  %488 = vst [vmem:[%s366 + $0xf0] sm:$0xf] %v487
                  %v489 = vld [vmem:[%s365 + $0x394] sm:$0xf]
                  %490 = vst [vmem:[%s366 + $0xf4] sm:$0xf] %v489
                  %v491 = vld [vmem:[%s365 + $0x398] sm:$0xf]
                  %492 = vst [vmem:[%s366 + $0xf8] sm:$0xf] %v491
                  %v493 = vld [vmem:[%s365 + $0x39c] sm:$0xf]
                  %494 = vst [vmem:[%s366 + $0xfc] sm:$0xf] %v493
                $region71: #{convnet_forward.1} parent=58 // loop_footer
                  %s364 = sadd.s32 1, %s360
                $region72: #{convnet_forward.1} parent=58 // loop_footer_branch
                  %359 = sbr.rel target = $region68
                $region73: #{convnet_forward.1} parent=58 // loop_exit
                  _
              $region59: #{convnet_forward.1} parent=43 // pred_fallthru
                _
            $region44: #{convnet_forward.1} parent=39 // pred_fallthru
              _
            // Predicated region
            $region45: #{convnet_forward.1} parent=39 // pred_check
              _
            $region46: #{convnet_forward.1} parent=39 // pred_check_branch
              %210 = sbr.rel (0) target = $region48
            $region47: #{convnet_forward.1} parent=39 // pred_region
              loop: start=0, step=1, limit=1
              $region49: #{convnet_forward.1} parent=47 // loop_pre_header
                _
              $region50: #{convnet_forward.1} parent=47 // loop_header
                %s213 = sphi 0, %s217
                %p214 = scmp.ge.s32.totalorder %s213, 1
                %s218 = sphi %s204, %s204
                %s219 = sphi %s198, %s198
              $region51: #{convnet_forward.1} parent=47 // loop_header_branch
                %216 = sbr.rel (%p214) target = $region55
              $region52: #{convnet_forward.1} parent=47 // loop_body
                %v220 = vld [vmem:[%s218] sm:$0xf]
                %221 = vst [vmem:[%s219] sm:$0xf] %v220
                %v222 = vld [vmem:[%s218 + $0x4] sm:$0xf]
                %223 = vst [vmem:[%s219 + $0x4] sm:$0xf] %v222
                %v224 = vld [vmem:[%s218 + $0x8] sm:$0xf]
                %225 = vst [vmem:[%s219 + $0x8] sm:$0xf] %v224
                %v226 = vld [vmem:[%s218 + $0xc] sm:$0xf]
                %227 = vst [vmem:[%s219 + $0xc] sm:$0xf] %v226
                %v228 = vld [vmem:[%s218 + $0x10] sm:$0xf]
                %229 = vst [vmem:[%s219 + $0x10] sm:$0xf] %v228
                %v230 = vld [vmem:[%s218 + $0x14] sm:$0xf]
                %231 = vst [vmem:[%s219 + $0x14] sm:$0xf] %v230
                %v232 = vld [vmem:[%s218 + $0x18] sm:$0xf]
                %233 = vst [vmem:[%s219 + $0x18] sm:$0xf] %v232
                %v234 = vld [vmem:[%s218 + $0x1c] sm:$0xf]
                %235 = vst [vmem:[%s219 + $0x1c] sm:$0xf] %v234
                %v236 = vld [vmem:[%s218 + $0x80] sm:$0xf]
                %237 = vst [vmem:[%s219 + $0x20] sm:$0xf] %v236
                %v238 = vld [vmem:[%s218 + $0x84] sm:$0xf]
                %239 = vst [vmem:[%s219 + $0x24] sm:$0xf] %v238
                %v240 = vld [vmem:[%s218 + $0x88] sm:$0xf]
                %241 = vst [vmem:[%s219 + $0x28] sm:$0xf] %v240
                %v242 = vld [vmem:[%s218 + $0x8c] sm:$0xf]
                %243 = vst [vmem:[%s219 + $0x2c] sm:$0xf] %v242
                %v244 = vld [vmem:[%s218 + $0x90] sm:$0xf]
                %245 = vst [vmem:[%s219 + $0x30] sm:$0xf] %v244
                %v246 = vld [vmem:[%s218 + $0x94] sm:$0xf]
                %247 = vst [vmem:[%s219 + $0x34] sm:$0xf] %v246
                %v248 = vld [vmem:[%s218 + $0x98] sm:$0xf]
                %249 = vst [vmem:[%s219 + $0x38] sm:$0xf] %v248
                %v250 = vld [vmem:[%s218 + $0x9c] sm:$0xf]
                %251 = vst [vmem:[%s219 + $0x3c] sm:$0xf] %v250
                %v252 = vld [vmem:[%s218 + $0x100] sm:$0xf]
                %253 = vst [vmem:[%s219 + $0x40] sm:$0xf] %v252
                %v254 = vld [vmem:[%s218 + $0x104] sm:$0xf]
                %255 = vst [vmem:[%s219 + $0x44] sm:$0xf] %v254
                %v256 = vld [vmem:[%s218 + $0x108] sm:$0xf]
                %257 = vst [vmem:[%s219 + $0x48] sm:$0xf] %v256
                %v258 = vld [vmem:[%s218 + $0x10c] sm:$0xf]
                %259 = vst [vmem:[%s219 + $0x4c] sm:$0xf] %v258
                %v260 = vld [vmem:[%s218 + $0x110] sm:$0xf]
                %261 = vst [vmem:[%s219 + $0x50] sm:$0xf] %v260
                %v262 = vld [vmem:[%s218 + $0x114] sm:$0xf]
                %263 = vst [vmem:[%s219 + $0x54] sm:$0xf] %v262
                %v264 = vld [vmem:[%s218 + $0x118] sm:$0xf]
                %265 = vst [vmem:[%s219 + $0x58] sm:$0xf] %v264
                %v266 = vld [vmem:[%s218 + $0x11c] sm:$0xf]
                %267 = vst [vmem:[%s219 + $0x5c] sm:$0xf] %v266
                %v268 = vld [vmem:[%s218 + $0x180] sm:$0xf]
                %269 = vst [vmem:[%s219 + $0x60] sm:$0xf] %v268
                %v270 = vld [vmem:[%s218 + $0x184] sm:$0xf]
                %271 = vst [vmem:[%s219 + $0x64] sm:$0xf] %v270
                %v272 = vld [vmem:[%s218 + $0x188] sm:$0xf]
                %273 = vst [vmem:[%s219 + $0x68] sm:$0xf] %v272
                %v274 = vld [vmem:[%s218 + $0x18c] sm:$0xf]
                %275 = vst [vmem:[%s219 + $0x6c] sm:$0xf] %v274
                %v276 = vld [vmem:[%s218 + $0x190] sm:$0xf]
                %277 = vst [vmem:[%s219 + $0x70] sm:$0xf] %v276
                %v278 = vld [vmem:[%s218 + $0x194] sm:$0xf]
                %279 = vst [vmem:[%s219 + $0x74] sm:$0xf] %v278
                %v280 = vld [vmem:[%s218 + $0x198] sm:$0xf]
                %281 = vst [vmem:[%s219 + $0x78] sm:$0xf] %v280
                %v282 = vld [vmem:[%s218 + $0x19c] sm:$0xf]
                %283 = vst [vmem:[%s219 + $0x7c] sm:$0xf] %v282
                %v284 = vld [vmem:[%s218 + $0x200] sm:$0xf]
                %285 = vst [vmem:[%s219 + $0x80] sm:$0xf] %v284
                %v286 = vld [vmem:[%s218 + $0x204] sm:$0xf]
                %287 = vst [vmem:[%s219 + $0x84] sm:$0xf] %v286
                %v288 = vld [vmem:[%s218 + $0x208] sm:$0xf]
                %289 = vst [vmem:[%s219 + $0x88] sm:$0xf] %v288
                %v290 = vld [vmem:[%s218 + $0x20c] sm:$0xf]
                %291 = vst [vmem:[%s219 + $0x8c] sm:$0xf] %v290
                %v292 = vld [vmem:[%s218 + $0x210] sm:$0xf]
                %293 = vst [vmem:[%s219 + $0x90] sm:$0xf] %v292
                %v294 = vld [vmem:[%s218 + $0x214] sm:$0xf]
                %295 = vst [vmem:[%s219 + $0x94] sm:$0xf] %v294
                %v296 = vld [vmem:[%s218 + $0x218] sm:$0xf]
                %297 = vst [vmem:[%s219 + $0x98] sm:$0xf] %v296
                %v298 = vld [vmem:[%s218 + $0x21c] sm:$0xf]
                %299 = vst [vmem:[%s219 + $0x9c] sm:$0xf] %v298
                %v300 = vld [vmem:[%s218 + $0x280] sm:$0xf]
                %301 = vst [vmem:[%s219 + $0xa0] sm:$0xf] %v300
                %v302 = vld [vmem:[%s218 + $0x284] sm:$0xf]
                %303 = vst [vmem:[%s219 + $0xa4] sm:$0xf] %v302
                %v304 = vld [vmem:[%s218 + $0x288] sm:$0xf]
                %305 = vst [vmem:[%s219 + $0xa8] sm:$0xf] %v304
                %v306 = vld [vmem:[%s218 + $0x28c] sm:$0xf]
                %307 = vst [vmem:[%s219 + $0xac] sm:$0xf] %v306
                %v308 = vld [vmem:[%s218 + $0x290] sm:$0xf]
                %309 = vst [vmem:[%s219 + $0xb0] sm:$0xf] %v308
                %v310 = vld [vmem:[%s218 + $0x294] sm:$0xf]
                %311 = vst [vmem:[%s219 + $0xb4] sm:$0xf] %v310
                %v312 = vld [vmem:[%s218 + $0x298] sm:$0xf]
                %313 = vst [vmem:[%s219 + $0xb8] sm:$0xf] %v312
                %v314 = vld [vmem:[%s218 + $0x29c] sm:$0xf]
                %315 = vst [vmem:[%s219 + $0xbc] sm:$0xf] %v314
                %v316 = vld [vmem:[%s218 + $0x300] sm:$0xf]
                %317 = vst [vmem:[%s219 + $0xc0] sm:$0xf] %v316
                %v318 = vld [vmem:[%s218 + $0x304] sm:$0xf]
                %319 = vst [vmem:[%s219 + $0xc4] sm:$0xf] %v318
                %v320 = vld [vmem:[%s218 + $0x308] sm:$0xf]
                %321 = vst [vmem:[%s219 + $0xc8] sm:$0xf] %v320
                %v322 = vld [vmem:[%s218 + $0x30c] sm:$0xf]
                %323 = vst [vmem:[%s219 + $0xcc] sm:$0xf] %v322
                %v324 = vld [vmem:[%s218 + $0x310] sm:$0xf]
                %325 = vst [vmem:[%s219 + $0xd0] sm:$0xf] %v324
                %v326 = vld [vmem:[%s218 + $0x314] sm:$0xf]
                %327 = vst [vmem:[%s219 + $0xd4] sm:$0xf] %v326
                %v328 = vld [vmem:[%s218 + $0x318] sm:$0xf]
                %329 = vst [vmem:[%s219 + $0xd8] sm:$0xf] %v328
                %v330 = vld [vmem:[%s218 + $0x31c] sm:$0xf]
                %331 = vst [vmem:[%s219 + $0xdc] sm:$0xf] %v330
                %v332 = vld [vmem:[%s218 + $0x380] sm:$0xf]
                %333 = vst [vmem:[%s219 + $0xe0] sm:$0xf] %v332
                %v334 = vld [vmem:[%s218 + $0x384] sm:$0xf]
                %335 = vst [vmem:[%s219 + $0xe4] sm:$0xf] %v334
                %v336 = vld [vmem:[%s218 + $0x388] sm:$0xf]
                %337 = vst [vmem:[%s219 + $0xe8] sm:$0xf] %v336
                %v338 = vld [vmem:[%s218 + $0x38c] sm:$0xf]
                %339 = vst [vmem:[%s219 + $0xec] sm:$0xf] %v338
                %v340 = vld [vmem:[%s218 + $0x390] sm:$0xf]
                %341 = vst [vmem:[%s219 + $0xf0] sm:$0xf] %v340
                %v342 = vld [vmem:[%s218 + $0x394] sm:$0xf]
                %343 = vst [vmem:[%s219 + $0xf4] sm:$0xf] %v342
                %v344 = vld [vmem:[%s218 + $0x398] sm:$0xf]
                %345 = vst [vmem:[%s219 + $0xf8] sm:$0xf] %v344
                %v346 = vld [vmem:[%s218 + $0x39c] sm:$0xf]
                %347 = vst [vmem:[%s219 + $0xfc] sm:$0xf] %v346
              $region53: #{convnet_forward.1} parent=47 // loop_footer
                %s217 = sadd.s32 1, %s213
              $region54: #{convnet_forward.1} parent=47 // loop_footer_branch
                %212 = sbr.rel target = $region50
              $region55: #{convnet_forward.1} parent=47 // loop_exit
                _
            $region48: #{convnet_forward.1} parent=39 // pred_fallthru
              _
          $region40: #{convnet_forward.1} parent=35 // pred_fallthru
            _
          %495 = vnop
        $region36: #{convnet_forward.1} parent=31 // pred_fallthru
          _
      $region32: #{convnet_forward.1} parent=5 // pred_fallthru
        _
      %p496 = scmp.le.s32.totalorder 1, %s11
      %p497 = scmp.lt.s32.totalorder %s11, 5
      %p498 = pnand %p496, %p497
      %p499 = pneg %p498
      // Predicated region
      $region74: #{convnet_forward.1} parent=5 // pred_check
        _
      $region75: #{convnet_forward.1} parent=5 // pred_check_branch
        %501 = sbr.rel (%p498) target = $region77
      $region76: #{convnet_forward.1} parent=5 // pred_region
        %s502 = ssub.s32 %s11, 1
        %s503 = sand.u32 %s38, 1
        %s504 = sand.u32 %s38, 1
        %s505 = smul.addr %s504, 256
        %s506 = scalar_lea.vmem [#allocation3], %s505
        // Predicated region
        $region78: #{convnet_forward.1} parent=76 // pred_check
          %p507 = pneg %p51
        $region79: #{convnet_forward.1} parent=76 // pred_check_branch
          %509 = sbr.rel (%p507) target = $region81
        $region80: #{convnet_forward.1} parent=76 // pred_region
          _
        $region81: #{convnet_forward.1} parent=76 // pred_fallthru
          _
        %s510 = sand.u32 %s38, 1
        %s511 = sand.u32 %s38, 1
        %s512 = smul.addr %s511, 256
        %s513 = scalar_lea.vmem [#allocation3], %s512
        %p514 = pneg %p51
        %p515 = pneg %p48
        %p516 = pneg %p72
        %p517 = pneg %p69
        %p518 = pneg %p93
        %p519 = pneg %p90
        %p520 = pneg %p114
        %p521 = pneg %p111
        %p522 = pneg %p135
        %p523 = pneg %p132
        %p524 = pneg %p161
        %p525 = pneg %p158
        %p526 = scmp.lt.s32.totalorder %s20, 0
        %s527 = scalar_select %p526, %s20, 0
        %s528 = smul.addr %s527, 8
        %s529 = scalar_lea.vmem %s5, %s528
        %s530 = smul.u32 8, %s20
        %s531 = smul.u32 8, %s21
        %p532 = scmp.lt.s32.totalorder %s20, 0
        %s533 = scalar_select %p532, %s20, 0
        %s534 = smul.addr %s533, 8
        %s535 = scalar_lea.vmem %s5, %s534
        %p537 = scmp.eq.s32.totalorder %s21, 0
        // Predicated region
        $region82: #{convnet_forward.1} parent=76 // pred_check
          %p538 = pneg %p537
        $region83: #{convnet_forward.1} parent=76 // pred_check_branch
          %540 = sbr.rel (%p538) target = $region85
        $region84: #{convnet_forward.1} parent=76 // pred_region
          %541 = vst [vmem:[#allocation2] sm:$0xff] 0.0
        $region85: #{convnet_forward.1} parent=76 // pred_fallthru
          _
        %v542 = vld [vmem:[%s506] sm:$0xf]
        %v543 = vld [vmem:[%s506 + $0x4] sm:$0xf]
        %v544 = vld [vmem:[%s506 + $0x8] sm:$0xf]
        %v545 = vld [vmem:[%s506 + $0xc] sm:$0xf]
        %v546 = vld [vmem:[%s506 + $0x10] sm:$0xf]
        %v547 = vld [vmem:[%s506 + $0x14] sm:$0xf]
        %v548 = vld [vmem:[%s506 + $0x18] sm:$0xf]
        %v549 = vld [vmem:[%s506 + $0x1c] sm:$0xf]
        %v550 = vld [vmem:[%s506 + $0x20] sm:$0xf]
        %v551 = vld [vmem:[%s506 + $0x24] sm:$0xf]
        %v552 = vld [vmem:[%s506 + $0x28] sm:$0xf]
        %v553 = vld [vmem:[%s506 + $0x2c] sm:$0xf]
        %v554 = vld [vmem:[%s506 + $0x30] sm:$0xf]
        %v555 = vld [vmem:[%s506 + $0x34] sm:$0xf]
        %v556 = vld [vmem:[%s506 + $0x38] sm:$0xf]
        %v557 = vld [vmem:[%s506 + $0x3c] sm:$0xf]
        %v558 = vld [vmem:[%s506 + $0x40] sm:$0xf]
        %v559 = vld [vmem:[%s506 + $0x44] sm:$0xf]
        %v560 = vld [vmem:[%s506 + $0x48] sm:$0xf]
        %v561 = vld [vmem:[%s506 + $0x4c] sm:$0xf]
        %v562 = vld [vmem:[%s506 + $0x50] sm:$0xf]
        %v563 = vld [vmem:[%s506 + $0x54] sm:$0xf]
        %v564 = vld [vmem:[%s506 + $0x58] sm:$0xf]
        %v565 = vld [vmem:[%s506 + $0x5c] sm:$0xf]
        %v566 = vld [vmem:[%s506 + $0x60] sm:$0xf]
        %v567 = vld [vmem:[%s506 + $0x64] sm:$0xf]
        %v568 = vld [vmem:[%s506 + $0x68] sm:$0xf]
        %v569 = vld [vmem:[%s506 + $0x6c] sm:$0xf]
        %v570 = vld [vmem:[%s506 + $0x70] sm:$0xf]
        %v571 = vld [vmem:[%s506 + $0x74] sm:$0xf]
        %v572 = vld [vmem:[%s506 + $0x78] sm:$0xf]
        %v573 = vld [vmem:[%s506 + $0x7c] sm:$0xf]
        %v574 = vld [vmem:[%s506 + $0x80] sm:$0xf]
        %v575 = vld [vmem:[%s506 + $0x84] sm:$0xf]
        %v576 = vld [vmem:[%s506 + $0x88] sm:$0xf]
        %v577 = vld [vmem:[%s506 + $0x8c] sm:$0xf]
        %v578 = vld [vmem:[%s506 + $0x90] sm:$0xf]
        %v579 = vld [vmem:[%s506 + $0x94] sm:$0xf]
        %v580 = vld [vmem:[%s506 + $0x98] sm:$0xf]
        %v581 = vld [vmem:[%s506 + $0x9c] sm:$0xf]
        %v582 = vld [vmem:[%s506 + $0xa0] sm:$0xf]
        %v583 = vld [vmem:[%s506 + $0xa4] sm:$0xf]
        %v584 = vld [vmem:[%s506 + $0xa8] sm:$0xf]
        %v585 = vld [vmem:[%s506 + $0xac] sm:$0xf]
        %v586 = vld [vmem:[%s506 + $0xb0] sm:$0xf]
        %v587 = vld [vmem:[%s506 + $0xb4] sm:$0xf]
        %v588 = vld [vmem:[%s506 + $0xb8] sm:$0xf]
        %v589 = vld [vmem:[%s506 + $0xbc] sm:$0xf]
        %v590 = vld [vmem:[%s506 + $0xc0] sm:$0xf]
        %v591 = vld [vmem:[%s506 + $0xc4] sm:$0xf]
        %v592 = vld [vmem:[%s506 + $0xc8] sm:$0xf]
        %v593 = vld [vmem:[%s506 + $0xcc] sm:$0xf]
        %v594 = vld [vmem:[%s506 + $0xd0] sm:$0xf]
        %v595 = vld [vmem:[%s506 + $0xd4] sm:$0xf]
        %v596 = vld [vmem:[%s506 + $0xd8] sm:$0xf]
        %v597 = vld [vmem:[%s506 + $0xdc] sm:$0xf]
        %v598 = vld [vmem:[%s506 + $0xe0] sm:$0xf]
        %v599 = vld [vmem:[%s506 + $0xe4] sm:$0xf]
        %v600 = vld [vmem:[%s506 + $0xe8] sm:$0xf]
        %v601 = vld [vmem:[%s506 + $0xec] sm:$0xf]
        %v602 = vld [vmem:[%s506 + $0xf0] sm:$0xf]
        %v603 = vld [vmem:[%s506 + $0xf4] sm:$0xf]
        %v604 = vld [vmem:[%s506 + $0xf8] sm:$0xf]
        %v605 = vld [vmem:[%s506 + $0xfc] sm:$0xf]
        %v606 = vld [vmem:[%s1] sm:$0xf]
        %v607 = vld [vmem:[%s1 + $0x4] sm:$0xf]
        %v608 = vld [vmem:[%s1 + $0x8] sm:$0xf]
        %v609 = vld [vmem:[%s1 + $0xc] sm:$0xf]
        %v610 = vld [vmem:[%s1 + $0x10] sm:$0x3]
        %v611 = vld [vmem:[%s2] sm:$0x1]
        %v613 = vlaneseq
        %v614 = vshrl.u32 %v613, 7
        %v615 = vsub.s32 0, %v614
        %v616 = vrot.slane %v611, %v615
        %v682 = vunpack.c.l.b16 %v542
        %v683 = vunpack.c.l.b16 %v543
        %v684 = vunpack.c.l.b16 %v544
        %v685 = vunpack.c.l.b16 %v545
        %v686 = vunpack.c.l.b16 %v546
        %v687 = vunpack.c.l.b16 %v547
        %v688 = vunpack.c.l.b16 %v548
        %v689 = vunpack.c.l.b16 %v549
        %v690 = vunpack.c.l.b16 %v550
        %v691 = vunpack.c.l.b16 %v551
        %v692 = vunpack.c.l.b16 %v552
        %v693 = vunpack.c.l.b16 %v553
        %v694 = vunpack.c.l.b16 %v554
        %v695 = vunpack.c.l.b16 %v555
        %v696 = vunpack.c.l.b16 %v556
        %v697 = vunpack.c.l.b16 %v557
        %v698 = vunpack.c.l.b16 %v558
        %v699 = vunpack.c.l.b16 %v559
        %v700 = vunpack.c.l.b16 %v560
        %v701 = vunpack.c.l.b16 %v561
        %v702 = vunpack.c.l.b16 %v562
        %v703 = vunpack.c.l.b16 %v563
        %v704 = vunpack.c.l.b16 %v564
        %v705 = vunpack.c.l.b16 %v565
        %v706 = vunpack.c.l.b16 %v566
        %v707 = vunpack.c.l.b16 %v567
        %v708 = vunpack.c.l.b16 %v568
        %v709 = vunpack.c.l.b16 %v569
        %v710 = vunpack.c.l.b16 %v570
        %v711 = vunpack.c.l.b16 %v571
        %v712 = vunpack.c.l.b16 %v572
        %v713 = vunpack.c.l.b16 %v573
        %v714 = vunpack.c.l.b16 %v574
        %v715 = vunpack.c.l.b16 %v575
        %v716 = vunpack.c.l.b16 %v576
        %v717 = vunpack.c.l.b16 %v577
        %v718 = vunpack.c.l.b16 %v578
        %v719 = vunpack.c.l.b16 %v579
        %v720 = vunpack.c.l.b16 %v580
        %v721 = vunpack.c.l.b16 %v581
        %v722 = vunpack.c.l.b16 %v582
        %v723 = vunpack.c.l.b16 %v583
        %v724 = vunpack.c.l.b16 %v584
        %v725 = vunpack.c.l.b16 %v585
        %v726 = vunpack.c.l.b16 %v586
        %v727 = vunpack.c.l.b16 %v587
        %v728 = vunpack.c.l.b16 %v588
        %v729 = vunpack.c.l.b16 %v589
        %v730 = vunpack.c.l.b16 %v590
        %v731 = vunpack.c.l.b16 %v591
        %v732 = vunpack.c.l.b16 %v592
        %v733 = vunpack.c.l.b16 %v593
        %v734 = vunpack.c.l.b16 %v594
        %v735 = vunpack.c.l.b16 %v595
        %v736 = vunpack.c.l.b16 %v596
        %v737 = vunpack.c.l.b16 %v597
        %v738 = vunpack.c.l.b16 %v598
        %v739 = vunpack.c.l.b16 %v599
        %v740 = vunpack.c.l.b16 %v600
        %v741 = vunpack.c.l.b16 %v601
        %v742 = vunpack.c.l.b16 %v602
        %v743 = vunpack.c.l.b16 %v603
        %v744 = vunpack.c.l.b16 %v604
        %v745 = vunpack.c.l.b16 %v605
        %v746 = vpack.c.b16 %v683, %v682
        %v747 = vpack.c.b16 %v685, %v684
        %v748 = vpack.c.b16 %v687, %v686
        %v749 = vpack.c.b16 %v689, %v688
        %v750 = vpack.c.b16 %v691, %v690
        %v751 = vpack.c.b16 %v693, %v692
        %v752 = vpack.c.b16 %v695, %v694
        %v753 = vpack.c.b16 %v697, %v696
        %v754 = vpack.c.b16 %v699, %v698
        %v755 = vpack.c.b16 %v701, %v700
        %v756 = vpack.c.b16 %v703, %v702
        %v757 = vpack.c.b16 %v705, %v704
        %v758 = vpack.c.b16 %v707, %v706
        %v759 = vpack.c.b16 %v709, %v708
        %v760 = vpack.c.b16 %v711, %v710
        %v761 = vpack.c.b16 %v713, %v712
        %v762 = vpack.c.b16 %v715, %v714
        %v763 = vpack.c.b16 %v717, %v716
        %v764 = vpack.c.b16 %v719, %v718
        %v765 = vpack.c.b16 %v721, %v720
        %v766 = vpack.c.b16 %v723, %v722
        %v767 = vpack.c.b16 %v725, %v724
        %v768 = vpack.c.b16 %v727, %v726
        %v769 = vpack.c.b16 %v729, %v728
        %v770 = vpack.c.b16 %v731, %v730
        %v771 = vpack.c.b16 %v733, %v732
        %v772 = vpack.c.b16 %v735, %v734
        %v773 = vpack.c.b16 %v737, %v736
        %v774 = vpack.c.b16 %v739, %v738
        %v775 = vpack.c.b16 %v741, %v740
        %v776 = vpack.c.b16 %v743, %v742
        %v777 = vpack.c.b16 %v745, %v744
        %v783 = vunpack.c.l.b16 %v606
        %v784 = vunpack.c.l.b16 %v607
        %v785 = vunpack.c.l.b16 %v608
        %v786 = vunpack.c.l.b16 %v609
        %v787 = vunpack.c.l.b16 %v610
        %v788 = vpack.c.b16 %v784, %v783
        %v789 = vpack.c.b16 %v786, %v785
        %v790 = vpack.c.b16 %v787, %v787
        %vm793 = vcmask 293888
        %v795 = vsel %vm793, %v746, 0
        %v798 = vsel %vm793, %v747, 0
        %v801 = vsel %vm793, %v748, 0
        %v804 = vsel %vm793, %v749, 0
        %v807 = vsel %vm793, %v750, 0
        %v810 = vsel %vm793, %v751, 0
        %v813 = vsel %vm793, %v752, 0
        %v816 = vsel %vm793, %v753, 0
        %v819 = vsel %vm793, %v754, 0
        %v822 = vsel %vm793, %v755, 0
        %v825 = vsel %vm793, %v756, 0
        %v828 = vsel %vm793, %v757, 0
        %v831 = vsel %vm793, %v758, 0
        %v834 = vsel %vm793, %v759, 0
        %v837 = vsel %vm793, %v760, 0
        %v840 = vsel %vm793, %v761, 0
        %v843 = vsel %vm793, %v762, 0
        %v846 = vsel %vm793, %v763, 0
        %v849 = vsel %vm793, %v764, 0
        %v852 = vsel %vm793, %v765, 0
        %v855 = vsel %vm793, %v766, 0
        %v858 = vsel %vm793, %v767, 0
        %v861 = vsel %vm793, %v768, 0
        %v864 = vsel %vm793, %v769, 0
        %v867 = vsel %vm793, %v770, 0
        %v870 = vsel %vm793, %v771, 0
        %v873 = vsel %vm793, %v772, 0
        %v876 = vsel %vm793, %v773, 0
        %v879 = vsel %vm793, %v774, 0
        %v882 = vsel %vm793, %v775, 0
        %v885 = vsel %vm793, %v776, 0
        %v888 = vsel %vm793, %v777, 0
        %vm890 = vcmask 1041408
        %v892 = vsel %vm890, %v790, 0
        %894 = vmatprep.subr.bf16.mxu0 0
        %895 = vmatpush1.bf16.msra.mxu0 %v788
        %896 = vmatprep.subr.bf16.mxu0 0
        %897 = vmatpush1.bf16.msra.mxu0 %v789
        %898 = vmatprep.subr.bf16.mxu0 0
        %899 = vmatpush1.bf16.msra.mxu0 %v892
        %900 = vmatprep.subr.bf16.mxu0 0
        %901 = vmatpush1.bf16.msra.mxu0 0
        %902 = vmatprep.subr.bf16.mxu0 0
        %903 = vmatpush1.bf16.msra.mxu0 0
        %904 = vmatprep.subr.bf16.mxu0 0
        %905 = vmatpush1.bf16.msra.mxu0 0
        %906 = vmatprep.subr.bf16.mxu0 0
        %907 = vmatpush1.bf16.msra.mxu0 0
        %908 = vmatprep.subr.bf16.mxu0 0
        %909 = vmatpush1.bf16.msra.mxu0 0
        %910 = vmatprep.subr.bf16.mxu0 0
        %911 = vmatpush1.bf16.msra.mxu0 0
        %912 = vmatprep.subr.bf16.mxu0 0
        %913 = vmatpush1.bf16.msra.mxu0 0
        %914 = vmatprep.subr.bf16.mxu0 0
        %915 = vmatpush1.bf16.msra.mxu0 0
        %916 = vmatprep.subr.bf16.mxu0 0
        %917 = vmatpush1.bf16.msra.mxu0 0
        %918 = vmatprep.subr.bf16.mxu0 0
        %919 = vmatpush1.bf16.msra.mxu0 0
        %920 = vmatprep.subr.bf16.mxu0 0
        %921 = vmatpush1.bf16.msra.mxu0 0
        %922 = vmatprep.subr.bf16.mxu0 0
        %923 = vmatpush1.bf16.msra.mxu0 0
        %924 = vmatprep.subr.bf16.mxu0 0
        %925 = vmatpush1.bf16.msra.mxu0 0
        %926 = vmatprep.mubr.bf16.mxu0 0
        %927 = vmatmul.mubr.bf16.gmra.mrb[0].mxu0 %v795
        %v928 = vpop.f32.mrb[0].mxu0
        %v929 = vadd.f32 %v616, %v928
        %v930 = vpop.f32.mrb[0].mxu0
        %v931 = vpop.f32.mrb[0].mxu0
        %v932 = vadd.f32 %v616, %v931
        %v933 = vpop.f32.mrb[0].mxu0
        %934 = vmatprep.mubr.bf16.mxu0 0
        %935 = vmatmul.mubr.bf16.gmra.mrb[0].mxu0 %v798
        %v936 = vpop.f32.mrb[0].mxu0
        %v937 = vadd.f32 %v616, %v936
        %v938 = vpop.f32.mrb[0].mxu0
        %v939 = vpop.f32.mrb[0].mxu0
        %v940 = vadd.f32 %v616, %v939
        %v941 = vpop.f32.mrb[0].mxu0
        %942 = vmatprep.mubr.bf16.mxu0 0
        %943 = vmatmul.mubr.bf16.gmra.mrb[0].mxu0 %v801
        %v944 = vpop.f32.mrb[0].mxu0
        %v945 = vadd.f32 %v616, %v944
        %v946 = vpop.f32.mrb[0].mxu0
        %v947 = vpop.f32.mrb[0].mxu0
        %v948 = vadd.f32 %v616, %v947
        %v949 = vpop.f32.mrb[0].mxu0
        %950 = vmatprep.mubr.bf16.mxu0 0
        %951 = vmatmul.mubr.bf16.gmra.mrb[0].mxu0 %v804
        %v952 = vpop.f32.mrb[0].mxu0
        %v953 = vadd.f32 %v616, %v952
        %v954 = vpop.f32.mrb[0].mxu0
        %v955 = vpop.f32.mrb[0].mxu0
        %v956 = vadd.f32 %v616, %v955
        %v957 = vpop.f32.mrb[0].mxu0
        %958 = vmatprep.mubr.bf16.mxu0 0
        %959 = vmatmul.mubr.bf16.gmra.mrb[0].mxu0 %v807
        %v960 = vpop.f32.mrb[0].mxu0
        %v961 = vadd.f32 %v616, %v960
        %v962 = vpop.f32.mrb[0].mxu0
        %v963 = vpop.f32.mrb[0].mxu0
        %v964 = vadd.f32 %v616, %v963
        %v965 = vpop.f32.mrb[0].mxu0
        %966 = vmatprep.mubr.bf16.mxu0 0
        %967 = vmatmul.mubr.bf16.gmra.mrb[0].mxu0 %v810
        %v968 = vpop.f32.mrb[0].mxu0
        %v969 = vadd.f32 %v616, %v968
        %v970 = vpop.f32.mrb[0].mxu0
        %v971 = vpop.f32.mrb[0].mxu0
        %v972 = vadd.f32 %v616, %v971
        %v973 = vpop.f32.mrb[0].mxu0
        %974 = vmatprep.mubr.bf16.mxu0 0
        %975 = vmatmul.mubr.bf16.gmra.mrb[0].mxu0 %v813
        %v976 = vpop.f32.mrb[0].mxu0
        %v977 = vadd.f32 %v616, %v976
        %v978 = vpop.f32.mrb[0].mxu0
        %v979 = vpop.f32.mrb[0].mxu0
        %v980 = vadd.f32 %v616, %v979
        %v981 = vpop.f32.mrb[0].mxu0
        %982 = vmatprep.mubr.bf16.mxu0 0
        %983 = vmatmul.mubr.bf16.gmra.mrb[0].mxu0 %v816
        %v984 = vpop.f32.mrb[0].mxu0
        %v985 = vadd.f32 %v616, %v984
        %v986 = vpop.f32.mrb[0].mxu0
        %v987 = vpop.f32.mrb[0].mxu0
        %v988 = vadd.f32 %v616, %v987
        %v989 = vpop.f32.mrb[0].mxu0
        %990 = vmatprep.mubr.bf16.mxu0 0
        %991 = vmatmul.mubr.bf16.gmra.mrb[0].mxu0 %v819
        %v992 = vpop.f32.mrb[0].mxu0
        %v993 = vadd.f32 %v616, %v992
        %v994 = vpop.f32.mrb[0].mxu0
        %v995 = vpop.f32.mrb[0].mxu0
        %v996 = vadd.f32 %v616, %v995
        %v997 = vpop.f32.mrb[0].mxu0
        %998 = vmatprep.mubr.bf16.mxu0 0
        %999 = vmatmul.mubr.bf16.gmra.mrb[0].mxu0 %v822
        %v1000 = vpop.f32.mrb[0].mxu0
        %v1001 = vadd.f32 %v616, %v1000
        %v1002 = vpop.f32.mrb[0].mxu0
        %v1003 = vpop.f32.mrb[0].mxu0
        %v1004 = vadd.f32 %v616, %v1003
        %v1005 = vpop.f32.mrb[0].mxu0
        %1006 = vmatprep.mubr.bf16.mxu0 0
        %1007 = vmatmul.mubr.bf16.gmra.mrb[0].mxu0 %v825
        %v1008 = vpop.f32.mrb[0].mxu0
        %v1009 = vadd.f32 %v616, %v1008
        %v1010 = vpop.f32.mrb[0].mxu0
        %v1011 = vpop.f32.mrb[0].mxu0
        %v1012 = vadd.f32 %v616, %v1011
        %v1013 = vpop.f32.mrb[0].mxu0
        %1014 = vmatprep.mubr.bf16.mxu0 0
        %1015 = vmatmul.mubr.bf16.gmra.mrb[0].mxu0 %v828
        %v1016 = vpop.f32.mrb[0].mxu0
        %v1017 = vadd.f32 %v616, %v1016
        %v1018 = vpop.f32.mrb[0].mxu0
        %v1019 = vpop.f32.mrb[0].mxu0
        %v1020 = vadd.f32 %v616, %v1019
        %v1021 = vpop.f32.mrb[0].mxu0
        %1022 = vmatprep.mubr.bf16.mxu0 0
        %1023 = vmatmul.mubr.bf16.gmra.mrb[0].mxu0 %v831
        %v1024 = vpop.f32.mrb[0].mxu0
        %v1025 = vadd.f32 %v616, %v1024
        %v1026 = vpop.f32.mrb[0].mxu0
        %v1027 = vpop.f32.mrb[0].mxu0
        %v1028 = vadd.f32 %v616, %v1027
        %v1029 = vpop.f32.mrb[0].mxu0
        %1030 = vmatprep.mubr.bf16.mxu0 0
        %1031 = vmatmul.mubr.bf16.gmra.mrb[0].mxu0 %v834
        %v1032 = vpop.f32.mrb[0].mxu0
        %v1033 = vadd.f32 %v616, %v1032
        %v1034 = vpop.f32.mrb[0].mxu0
        %v1035 = vpop.f32.mrb[0].mxu0
        %v1036 = vadd.f32 %v616, %v1035
        %v1037 = vpop.f32.mrb[0].mxu0
        %1038 = vmatprep.mubr.bf16.mxu0 0
        %1039 = vmatmul.mubr.bf16.gmra.mrb[0].mxu0 %v837
        %v1040 = vpop.f32.mrb[0].mxu0
        %v1041 = vadd.f32 %v616, %v1040
        %v1042 = vpop.f32.mrb[0].mxu0
        %v1043 = vpop.f32.mrb[0].mxu0
        %v1044 = vadd.f32 %v616, %v1043
        %v1045 = vpop.f32.mrb[0].mxu0
        %1046 = vmatprep.mubr.bf16.mxu0 0
        %1047 = vmatmul.mubr.bf16.gmra.mrb[0].mxu0 %v840
        %v1048 = vpop.f32.mrb[0].mxu0
        %v1049 = vadd.f32 %v616, %v1048
        %v1050 = vpop.f32.mrb[0].mxu0
        %v1051 = vpop.f32.mrb[0].mxu0
        %v1052 = vadd.f32 %v616, %v1051
        %v1053 = vpop.f32.mrb[0].mxu0
        %1054 = vmatprep.mubr.bf16.mxu0 0
        %1055 = vmatmul.mubr.bf16.gmra.mrb[0].mxu0 %v843
        %v1056 = vpop.f32.mrb[0].mxu0
        %v1057 = vadd.f32 %v616, %v1056
        %v1058 = vpop.f32.mrb[0].mxu0
        %v1059 = vpop.f32.mrb[0].mxu0
        %v1060 = vadd.f32 %v616, %v1059
        %v1061 = vpop.f32.mrb[0].mxu0
        %1062 = vmatprep.mubr.bf16.mxu0 0
        %1063 = vmatmul.mubr.bf16.gmra.mrb[0].mxu0 %v846
        %v1064 = vpop.f32.mrb[0].mxu0
        %v1065 = vadd.f32 %v616, %v1064
        %v1066 = vpop.f32.mrb[0].mxu0
        %v1067 = vpop.f32.mrb[0].mxu0
        %v1068 = vadd.f32 %v616, %v1067
        %v1069 = vpop.f32.mrb[0].mxu0
        %1070 = vmatprep.mubr.bf16.mxu0 0
        %1071 = vmatmul.mubr.bf16.gmra.mrb[0].mxu0 %v849
        %v1072 = vpop.f32.mrb[0].mxu0
        %v1073 = vadd.f32 %v616, %v1072
        %v1074 = vpop.f32.mrb[0].mxu0
        %v1075 = vpop.f32.mrb[0].mxu0
        %v1076 = vadd.f32 %v616, %v1075
        %v1077 = vpop.f32.mrb[0].mxu0
        %1078 = vmatprep.mubr.bf16.mxu0 0
        %1079 = vmatmul.mubr.bf16.gmra.mrb[0].mxu0 %v852
        %v1080 = vpop.f32.mrb[0].mxu0
        %v1081 = vadd.f32 %v616, %v1080
        %v1082 = vpop.f32.mrb[0].mxu0
        %v1083 = vpop.f32.mrb[0].mxu0
        %v1084 = vadd.f32 %v616, %v1083
        %v1085 = vpop.f32.mrb[0].mxu0
        %1086 = vmatprep.mubr.bf16.mxu0 0
        %1087 = vmatmul.mubr.bf16.gmra.mrb[0].mxu0 %v855
        %v1088 = vpop.f32.mrb[0].mxu0
        %v1089 = vadd.f32 %v616, %v1088
        %v1090 = vpop.f32.mrb[0].mxu0
        %v1091 = vpop.f32.mrb[0].mxu0
        %v1092 = vadd.f32 %v616, %v1091
        %v1093 = vpop.f32.mrb[0].mxu0
        %1094 = vmatprep.mubr.bf16.mxu0 0
        %1095 = vmatmul.mubr.bf16.gmra.mrb[0].mxu0 %v858
        %v1096 = vpop.f32.mrb[0].mxu0
        %v1097 = vadd.f32 %v616, %v1096
        %v1098 = vpop.f32.mrb[0].mxu0
        %v1099 = vpop.f32.mrb[0].mxu0
        %v1100 = vadd.f32 %v616, %v1099
        %v1101 = vpop.f32.mrb[0].mxu0
        %1102 = vmatprep.mubr.bf16.mxu0 0
        %1103 = vmatmul.mubr.bf16.gmra.mrb[0].mxu0 %v861
        %v1104 = vpop.f32.mrb[0].mxu0
        %v1105 = vadd.f32 %v616, %v1104
        %v1106 = vpop.f32.mrb[0].mxu0
        %v1107 = vpop.f32.mrb[0].mxu0
        %v1108 = vadd.f32 %v616, %v1107
        %v1109 = vpop.f32.mrb[0].mxu0
        %1110 = vmatprep.mubr.bf16.mxu0 0
        %1111 = vmatmul.mubr.bf16.gmra.mrb[0].mxu0 %v864
        %v1112 = vpop.f32.mrb[0].mxu0
        %v1113 = vadd.f32 %v616, %v1112
        %v1114 = vpop.f32.mrb[0].mxu0
        %v1115 = vpop.f32.mrb[0].mxu0
        %v1116 = vadd.f32 %v616, %v1115
        %v1117 = vpop.f32.mrb[0].mxu0
        %1118 = vmatprep.mubr.bf16.mxu0 0
        %1119 = vmatmul.mubr.bf16.gmra.mrb[0].mxu0 %v867
        %v1120 = vpop.f32.mrb[0].mxu0
        %v1121 = vadd.f32 %v616, %v1120
        %v1122 = vpop.f32.mrb[0].mxu0
        %v1123 = vpop.f32.mrb[0].mxu0
        %v1124 = vadd.f32 %v616, %v1123
        %v1125 = vpop.f32.mrb[0].mxu0
        %1126 = vmatprep.mubr.bf16.mxu0 0
        %1127 = vmatmul.mubr.bf16.gmra.mrb[0].mxu0 %v870
        %v1128 = vpop.f32.mrb[0].mxu0
        %v1129 = vadd.f32 %v616, %v1128
        %v1130 = vpop.f32.mrb[0].mxu0
        %v1131 = vpop.f32.mrb[0].mxu0
        %v1132 = vadd.f32 %v616, %v1131
        %v1133 = vpop.f32.mrb[0].mxu0
        %1134 = vmatprep.mubr.bf16.mxu0 0
        %1135 = vmatmul.mubr.bf16.gmra.mrb[0].mxu0 %v873
        %v1136 = vpop.f32.mrb[0].mxu0
        %v1137 = vadd.f32 %v616, %v1136
        %v1138 = vpop.f32.mrb[0].mxu0
        %v1139 = vpop.f32.mrb[0].mxu0
        %v1140 = vadd.f32 %v616, %v1139
        %v1141 = vpop.f32.mrb[0].mxu0
        %1142 = vmatprep.mubr.bf16.mxu0 0
        %1143 = vmatmul.mubr.bf16.gmra.mrb[0].mxu0 %v876
        %v1144 = vpop.f32.mrb[0].mxu0
        %v1145 = vadd.f32 %v616, %v1144
        %v1146 = vpop.f32.mrb[0].mxu0
        %v1147 = vpop.f32.mrb[0].mxu0
        %v1148 = vadd.f32 %v616, %v1147
        %v1149 = vpop.f32.mrb[0].mxu0
        %1150 = vmatprep.mubr.bf16.mxu0 0
        %1151 = vmatmul.mubr.bf16.gmra.mrb[0].mxu0 %v879
        %v1152 = vpop.f32.mrb[0].mxu0
        %v1153 = vadd.f32 %v616, %v1152
        %v1154 = vpop.f32.mrb[0].mxu0
        %v1155 = vpop.f32.mrb[0].mxu0
        %v1156 = vadd.f32 %v616, %v1155
        %v1157 = vpop.f32.mrb[0].mxu0
        %1158 = vmatprep.mubr.bf16.mxu0 0
        %1159 = vmatmul.mubr.bf16.gmra.mrb[0].mxu0 %v882
        %v1160 = vpop.f32.mrb[0].mxu0
        %v1161 = vadd.f32 %v616, %v1160
        %v1162 = vpop.f32.mrb[0].mxu0
        %v1163 = vpop.f32.mrb[0].mxu0
        %v1164 = vadd.f32 %v616, %v1163
        %v1165 = vpop.f32.mrb[0].mxu0
        %1166 = vmatprep.mubr.bf16.mxu0 0
        %1167 = vmatmul.mubr.bf16.gmra.mrb[0].mxu0 %v885
        %v1168 = vpop.f32.mrb[0].mxu0
        %v1169 = vadd.f32 %v616, %v1168
        %v1170 = vpop.f32.mrb[0].mxu0
        %v1171 = vpop.f32.mrb[0].mxu0
        %v1172 = vadd.f32 %v616, %v1171
        %v1173 = vpop.f32.mrb[0].mxu0
        %1174 = vmatprep.mubr.bf16.mxu0 0
        %1175 = vmatmul.mubr.bf16.gmra.mrb[0].mxu0 %v888
        %v1176 = vpop.f32.mrb[0].mxu0
        %v1177 = vadd.f32 %v616, %v1176
        %v1178 = vpop.f32.mrb[0].mxu0
        %v1179 = vpop.f32.mrb[0].mxu0
        %v1180 = vadd.f32 %v616, %v1179
        %v1181 = vpop.f32.mrb[0].mxu0
        %1182 = vdwg.mxu0
        %v1183 = vmax.f32 %v929, 0.0
        %v1184 = vmax.f32 %v932, 0.0
        %v1185 = vmax.f32 %v937, 0.0
        %v1186 = vmax.f32 %v940, 0.0
        %v1187 = vmax.f32 %v945, 0.0
        %v1188 = vmax.f32 %v948, 0.0
        %v1189 = vmax.f32 %v953, 0.0
        %v1190 = vmax.f32 %v956, 0.0
        %v1191 = vmax.f32 %v961, 0.0
        %v1192 = vmax.f32 %v964, 0.0
        %v1193 = vmax.f32 %v969, 0.0
        %v1194 = vmax.f32 %v972, 0.0
        %v1195 = vmax.f32 %v977, 0.0
        %v1196 = vmax.f32 %v980, 0.0
        %v1197 = vmax.f32 %v985, 0.0
        %v1198 = vmax.f32 %v988, 0.0
        %v1199 = vmax.f32 %v993, 0.0
        %v1200 = vmax.f32 %v996, 0.0
        %v1201 = vmax.f32 %v1001, 0.0
        %v1202 = vmax.f32 %v1004, 0.0
        %v1203 = vmax.f32 %v1009, 0.0
        %v1204 = vmax.f32 %v1012, 0.0
        %v1205 = vmax.f32 %v1017, 0.0
        %v1206 = vmax.f32 %v1020, 0.0
        %v1207 = vmax.f32 %v1025, 0.0
        %v1208 = vmax.f32 %v1028, 0.0
        %v1209 = vmax.f32 %v1033, 0.0
        %v1210 = vmax.f32 %v1036, 0.0
        %v1211 = vmax.f32 %v1041, 0.0
        %v1212 = vmax.f32 %v1044, 0.0
        %v1213 = vmax.f32 %v1049, 0.0
        %v1214 = vmax.f32 %v1052, 0.0
        %v1215 = vmax.f32 %v1057, 0.0
        %v1216 = vmax.f32 %v1060, 0.0
        %v1217 = vmax.f32 %v1065, 0.0
        %v1218 = vmax.f32 %v1068, 0.0
        %v1219 = vmax.f32 %v1073, 0.0
        %v1220 = vmax.f32 %v1076, 0.0
        %v1221 = vmax.f32 %v1081, 0.0
        %v1222 = vmax.f32 %v1084, 0.0
        %v1223 = vmax.f32 %v1089, 0.0
        %v1224 = vmax.f32 %v1092, 0.0
        %v1225 = vmax.f32 %v1097, 0.0
        %v1226 = vmax.f32 %v1100, 0.0
        %v1227 = vmax.f32 %v1105, 0.0
        %v1228 = vmax.f32 %v1108, 0.0
        %v1229 = vmax.f32 %v1113, 0.0
        %v1230 = vmax.f32 %v1116, 0.0
        %v1231 = vmax.f32 %v1121, 0.0
        %v1232 = vmax.f32 %v1124, 0.0
        %v1233 = vmax.f32 %v1129, 0.0
        %v1234 = vmax.f32 %v1132, 0.0
        %v1235 = vmax.f32 %v1137, 0.0
        %v1236 = vmax.f32 %v1140, 0.0
        %v1237 = vmax.f32 %v1145, 0.0
        %v1238 = vmax.f32 %v1148, 0.0
        %v1239 = vmax.f32 %v1153, 0.0
        %v1240 = vmax.f32 %v1156, 0.0
        %v1241 = vmax.f32 %v1161, 0.0
        %v1242 = vmax.f32 %v1164, 0.0
        %v1243 = vmax.f32 %v1169, 0.0
        %v1244 = vmax.f32 %v1172, 0.0
        %v1245 = vmax.f32 %v1177, 0.0
        %v1246 = vmax.f32 %v1180, 0.0
        %v1247 = vld [vmem:[#allocation2] sm:$0xff]
        %v1248 = vadd.f32 %v1183, %v1184
        %v1249 = vadd.f32 %v1248, %v1185
        %v1250 = vadd.f32 %v1249, %v1186
        %v1251 = vadd.f32 %v1250, %v1187
        %v1252 = vadd.f32 %v1251, %v1188
        %v1253 = vadd.f32 %v1252, %v1189
        %v1254 = vadd.f32 %v1253, %v1190
        %v1255 = vrot.slane %v1254, 4
        %v1256 = vadd.f32 %v1254, %v1255
        %v1257 = vrot.slane %v1256, 2
        %v1258 = vadd.f32 %v1256, %v1257
        %v1259 = vrot.slane %v1258, 1
        %v1260 = vadd.f32 %v1258, %v1259
        %v1261 = vadd.f32 %v1191, %v1192
        %v1262 = vadd.f32 %v1261, %v1193
        %v1263 = vadd.f32 %v1262, %v1194
        %v1264 = vadd.f32 %v1263, %v1195
        %v1265 = vadd.f32 %v1264, %v1196
        %v1266 = vadd.f32 %v1265, %v1197
        %v1267 = vadd.f32 %v1266, %v1198
        %v1268 = vrot.slane %v1267, 4
        %v1269 = vadd.f32 %v1267, %v1268
        %v1270 = vrot.slane %v1269, 2
        %v1271 = vadd.f32 %v1269, %v1270
        %v1272 = vrot.slane %v1271, 1
        %v1273 = vadd.f32 %v1271, %v1272
        %v1274 = vadd.f32 %v1199, %v1200
        %v1275 = vadd.f32 %v1274, %v1201
        %v1276 = vadd.f32 %v1275, %v1202
        %v1277 = vadd.f32 %v1276, %v1203
        %v1278 = vadd.f32 %v1277, %v1204
        %v1279 = vadd.f32 %v1278, %v1205
        %v1280 = vadd.f32 %v1279, %v1206
        %v1281 = vrot.slane %v1280, 4
        %v1282 = vadd.f32 %v1280, %v1281
        %v1283 = vrot.slane %v1282, 2
        %v1284 = vadd.f32 %v1282, %v1283
        %v1285 = vrot.slane %v1284, 1
        %v1286 = vadd.f32 %v1284, %v1285
        %v1287 = vadd.f32 %v1207, %v1208
        %v1288 = vadd.f32 %v1287, %v1209
        %v1289 = vadd.f32 %v1288, %v1210
        %v1290 = vadd.f32 %v1289, %v1211
        %v1291 = vadd.f32 %v1290, %v1212
        %v1292 = vadd.f32 %v1291, %v1213
        %v1293 = vadd.f32 %v1292, %v1214
        %v1294 = vrot.slane %v1293, 4
        %v1295 = vadd.f32 %v1293, %v1294
        %v1296 = vrot.slane %v1295, 2
        %v1297 = vadd.f32 %v1295, %v1296
        %v1298 = vrot.slane %v1297, 1
        %v1299 = vadd.f32 %v1297, %v1298
        %v1300 = vadd.f32 %v1215, %v1216
        %v1301 = vadd.f32 %v1300, %v1217
        %v1302 = vadd.f32 %v1301, %v1218
        %v1303 = vadd.f32 %v1302, %v1219
        %v1304 = vadd.f32 %v1303, %v1220
        %v1305 = vadd.f32 %v1304, %v1221
        %v1306 = vadd.f32 %v1305, %v1222
        %v1307 = vrot.slane %v1306, 4
        %v1308 = vadd.f32 %v1306, %v1307
        %v1309 = vrot.slane %v1308, 2
        %v1310 = vadd.f32 %v1308, %v1309
        %v1311 = vrot.slane %v1310, 1
        %v1312 = vadd.f32 %v1310, %v1311
        %v1313 = vadd.f32 %v1223, %v1224
        %v1314 = vadd.f32 %v1313, %v1225
        %v1315 = vadd.f32 %v1314, %v1226
        %v1316 = vadd.f32 %v1315, %v1227
        %v1317 = vadd.f32 %v1316, %v1228
        %v1318 = vadd.f32 %v1317, %v1229
        %v1319 = vadd.f32 %v1318, %v1230
        %v1320 = vrot.slane %v1319, 4
        %v1321 = vadd.f32 %v1319, %v1320
        %v1322 = vrot.slane %v1321, 2
        %v1323 = vadd.f32 %v1321, %v1322
        %v1324 = vrot.slane %v1323, 1
        %v1325 = vadd.f32 %v1323, %v1324
        %v1326 = vadd.f32 %v1231, %v1232
        %v1327 = vadd.f32 %v1326, %v1233
        %v1328 = vadd.f32 %v1327, %v1234
        %v1329 = vadd.f32 %v1328, %v1235
        %v1330 = vadd.f32 %v1329, %v1236
        %v1331 = vadd.f32 %v1330, %v1237
        %v1332 = vadd.f32 %v1331, %v1238
        %v1333 = vrot.slane %v1332, 4
        %v1334 = vadd.f32 %v1332, %v1333
        %v1335 = vrot.slane %v1334, 2
        %v1336 = vadd.f32 %v1334, %v1335
        %v1337 = vrot.slane %v1336, 1
        %v1338 = vadd.f32 %v1336, %v1337
        %v1339 = vadd.f32 %v1239, %v1240
        %v1340 = vadd.f32 %v1339, %v1241
        %v1341 = vadd.f32 %v1340, %v1242
        %v1342 = vadd.f32 %v1341, %v1243
        %v1343 = vadd.f32 %v1342, %v1244
        %v1344 = vadd.f32 %v1343, %v1245
        %v1345 = vadd.f32 %v1344, %v1246
        %v1346 = vrot.slane %v1345, 4
        %v1347 = vadd.f32 %v1345, %v1346
        %v1348 = vrot.slane %v1347, 2
        %v1349 = vadd.f32 %v1347, %v1348
        %v1350 = vrot.slane %v1349, 1
        %v1351 = vadd.f32 %v1349, %v1350
        %vm1360 = vcmask 1041409
        %v1361 = vsel %vm1360, %v1273, %v1260
        %vm1362 = vcmask 1042434
        %v1363 = vsel %vm1362, %v1286, %v1361
        %vm1364 = vcmask 1043459
        %v1365 = vsel %vm1364, %v1299, %v1363
        %vm1366 = vcmask 1044484
        %v1367 = vsel %vm1366, %v1312, %v1365
        %vm1368 = vcmask 1045509
        %v1369 = vsel %vm1368, %v1325, %v1367
        %vm1370 = vcmask 1046534
        %v1371 = vsel %vm1370, %v1338, %v1369
        %vm1372 = vcmask 1047559
        %v1373 = vsel %vm1372, %v1351, %v1371
        %v1375 = vadd.f32 %v1247, %v1373
        %1376 = vst [vmem:[#allocation2] sm:$0xff] %v1375
        %p1377 = scmp.eq.s32.totalorder %s21, 3
        // Predicated region
        $region86: #{convnet_forward.1} parent=76 // pred_check
          %p1378 = pneg %p1377
        $region87: #{convnet_forward.1} parent=76 // pred_check_branch
          %1380 = sbr.rel (%p1378) target = $region89
        $region88: #{convnet_forward.1} parent=76 // pred_region
          %v1381 = vld [vmem:[#allocation2] sm:$0xff]
          %v1382 = vpack.c.bf16 %v1381, %v1381
          %v1383 = vld [vmem:[%s3] sm:$0xf]
          %v1384 = vld [vmem:[%s3 + $0x4] sm:$0xf]
          %v1385 = vld [vmem:[%s3 + $0x8] sm:$0xf]
          %v1386 = vld [vmem:[%s3 + $0xc] sm:$0xf]
          %v1387 = vld [vmem:[%s3 + $0x10] sm:$0xf]
          %v1388 = vld [vmem:[%s3 + $0x14] sm:$0xf]
          %v1389 = vld [vmem:[%s3 + $0x18] sm:$0xf]
          %v1390 = vld [vmem:[%s3 + $0x1c] sm:$0xf]
          %v1391 = vld [vmem:[%s3 + $0x20] sm:$0xf]
          %v1392 = vld [vmem:[%s3 + $0x24] sm:$0xf]
          %v1393 = vld [vmem:[%s3 + $0x28] sm:$0xf]
          %v1394 = vld [vmem:[%s3 + $0x2c] sm:$0xf]
          %v1395 = vld [vmem:[%s3 + $0x30] sm:$0xf]
          %v1396 = vld [vmem:[%s3 + $0x34] sm:$0xf]
          %v1397 = vld [vmem:[%s3 + $0x38] sm:$0xf]
          %v1398 = vld [vmem:[%s3 + $0x3c] sm:$0xf]
          %v1399 = vld [vmem:[%s4] sm:$0x1]
          %v1401 = vlaneseq
          %v1402 = vshrl.u32 %v1401, 7
          %v1403 = vsub.s32 0, %v1402
          %v1404 = vrot.slane %v1399, %v1403
          %v1422 = vunpack.c.l.b16 %v1383
          %v1423 = vunpack.c.l.b16 %v1384
          %v1424 = vunpack.c.l.b16 %v1385
          %v1425 = vunpack.c.l.b16 %v1386
          %v1426 = vunpack.c.l.b16 %v1387
          %v1427 = vunpack.c.l.b16 %v1388
          %v1428 = vunpack.c.l.b16 %v1389
          %v1429 = vunpack.c.l.b16 %v1390
          %v1430 = vunpack.c.l.b16 %v1391
          %v1431 = vunpack.c.l.b16 %v1392
          %v1432 = vunpack.c.l.b16 %v1393
          %v1433 = vunpack.c.l.b16 %v1394
          %v1434 = vunpack.c.l.b16 %v1395
          %v1435 = vunpack.c.l.b16 %v1396
          %v1436 = vunpack.c.l.b16 %v1397
          %v1437 = vunpack.c.l.b16 %v1398
          %v1438 = vpack.c.b16 %v1423, %v1422
          %v1439 = vpack.c.b16 %v1425, %v1424
          %v1440 = vpack.c.b16 %v1427, %v1426
          %v1441 = vpack.c.b16 %v1429, %v1428
          %v1442 = vpack.c.b16 %v1431, %v1430
          %v1443 = vpack.c.b16 %v1433, %v1432
          %v1444 = vpack.c.b16 %v1435, %v1434
          %v1445 = vpack.c.b16 %v1437, %v1436
          %1454 = vmatprep.subr.bf16.mxu0 0
          %1455 = vmatpush1.bf16.msra.mxu0 %v1438
          %1456 = vmatprep.subr.bf16.mxu0 0
          %1457 = vmatpush1.bf16.msra.mxu0 %v1439
          %1458 = vmatprep.subr.bf16.mxu0 0
          %1459 = vmatpush1.bf16.msra.mxu0 %v1440
          %1460 = vmatprep.subr.bf16.mxu0 0
          %1461 = vmatpush1.bf16.msra.mxu0 %v1441
          %1462 = vmatprep.subr.bf16.mxu0 0
          %1463 = vmatpush1.bf16.msra.mxu0 %v1442
          %1464 = vmatprep.subr.bf16.mxu0 0
          %1465 = vmatpush1.bf16.msra.mxu0 %v1443
          %1466 = vmatprep.subr.bf16.mxu0 0
          %1467 = vmatpush1.bf16.msra.mxu0 %v1444
          %1468 = vmatprep.subr.bf16.mxu0 0
          %1469 = vmatpush1.bf16.msra.mxu0 %v1445
          %1470 = vmatprep.subr.bf16.mxu0 0
          %1471 = vmatpush1.bf16.msra.mxu0 0
          %1472 = vmatprep.subr.bf16.mxu0 0
          %1473 = vmatpush1.bf16.msra.mxu0 0
          %1474 = vmatprep.subr.bf16.mxu0 0
          %1475 = vmatpush1.bf16.msra.mxu0 0
          %1476 = vmatprep.subr.bf16.mxu0 0
          %1477 = vmatpush1.bf16.msra.mxu0 0
          %1478 = vmatprep.subr.bf16.mxu0 0
          %1479 = vmatpush1.bf16.msra.mxu0 0
          %1480 = vmatprep.subr.bf16.mxu0 0
          %1481 = vmatpush1.bf16.msra.mxu0 0
          %1482 = vmatprep.subr.bf16.mxu0 0
          %1483 = vmatpush1.bf16.msra.mxu0 0
          %1484 = vmatprep.subr.bf16.mxu0 0
          %1485 = vmatpush1.bf16.msra.mxu0 0
          %1486 = vmatprep.mubr.bf16.mxu0 0
          %1487 = vmatmul.mubr.bf16.gmra.mrb[0].mxu0 %v1382
          %v1488 = vpop.f32.mrb[0].mxu0
          %v1489 = vadd.f32 %v1404, %v1488
          %v1490 = vpop.f32.mrb[0].mxu0
          %v1491 = vpop.f32.mrb[0].mxu0
          %v1492 = vpop.f32.mrb[0].mxu0
          %1493 = vdwg.mxu0
          %1494 = vst [vmem:[%s535] sm:$0xff] %v1489
        $region89: #{convnet_forward.1} parent=76 // pred_fallthru
          _
        %p1495 = scmp.lt.s32.totalorder %s20, 0
        %s1496 = scalar_select %p1495, %s20, 0
        %s1497 = smul.addr %s1496, 8
        %s1498 = scalar_lea.vmem %s5, %s1497
        // Predicated region
        $region90: #{convnet_forward.1} parent=76 // pred_check
          %p1499 = pneg %p158
        $region91: #{convnet_forward.1} parent=76 // pred_check_branch
          %1501 = sbr.rel (%p1499) target = $region93
        $region92: #{convnet_forward.1} parent=76 // pred_region
          _
        $region93: #{convnet_forward.1} parent=76 // pred_fallthru
          _
        // Predicated region
        $region94: #{convnet_forward.1} parent=76 // pred_check
          %p1502 = pneg %p158
        $region95: #{convnet_forward.1} parent=76 // pred_check_branch
          %1504 = sbr.rel (%p1502) target = $region97
        $region96: #{convnet_forward.1} parent=76 // pred_region
          %p1505 = scmp.lt.s32.totalorder %s20, 0
          %s1506 = scalar_select %p1505, %s20, 0
          %s1507 = smul.addr %s1506, 8
          %s1508 = scalar_lea.vmem %s5, %s1507
        $region97: #{convnet_forward.1} parent=76 // pred_fallthru
          _
      $region77: #{convnet_forward.1} parent=5 // pred_fallthru
        _
      %p1509 = scmp.le.s32.totalorder 2, %s11
      // Predicated region
      $region98: #{convnet_forward.1} parent=5 // pred_check
        %p1510 = pneg %p1509
      $region99: #{convnet_forward.1} parent=5 // pred_check_branch
        %1512 = sbr.rel (%p1510) target = $region101
      $region100: #{convnet_forward.1} parent=5 // pred_region
        %s1513 = ssub.s32 %s11, 2
      $region101: #{convnet_forward.1} parent=5 // pred_fallthru
        _
    $region6: #{convnet_forward.1} parent=1 // loop_footer
      %s15 = sadd.s32 1, %s11
    $region7: #{convnet_forward.1} parent=1 // loop_footer_branch
      %10 = sbr.rel target = $region3
    $region8: #{convnet_forward.1} parent=1 // loop_exit
      _

</llo_original>
